<compile_context>
chip_gen: v6e
topology: v6e:2x2x1
jax: 0.10.0
libtpu: 0.0.40
codegen_flags: <defaults>
</compile_context>

<pallas_src>
import functools

import jax
import jax.numpy as jnp
from jax import lax
from jax.experimental import pallas as pl
from jax.experimental.pallas import tpu as pltpu


def _round_up(x, m):
    return (x + m - 1) // m * m


def _pad_to(a, shape):
    pads = [(0, t - s) for s, t in zip(a.shape, shape)]
    if all(p == (0, 0) for p in pads):
        return a
    return jnp.pad(a, pads)


def _lane_tiling(m, *, max_tile=1024, min_split=2):
    """Lane-tile size (multiple of 128) and padded extent for a length-m axis.

    Splits into at least `min_split` tiles so both v7x TensorCores get work,
    capping the tile at `max_tile` lanes when the batch grows.
    """
    tile = _round_up(-(-m // min_split), 128)
    tile = min(tile, max_tile)
    mp = _round_up(m, tile)
    return mp, tile


# ---------------------------------------------------------------------------
# Pallas kernels
# ---------------------------------------------------------------------------
def _conv_t_kernel(w_ref, b_ref, p_ref, *out_refs, emit_preact):
    """One lane-tile of out_T = tanh(W @ patches_T + b); optional pre-act out."""
    acc = jnp.dot(w_ref[...], p_ref[...], preferred_element_type=jnp.float32)
    acc = acc + b_ref[...]                              # (Cp, tile) + (Cp, 1)
    if emit_preact:
        pre_ref, act_ref = out_refs
        pre_ref[...] = acc.astype(pre_ref.dtype)
    else:
        (act_ref,) = out_refs
    act_ref[...] = jnp.tanh(acc).astype(act_ref.dtype)


def conv_transposed_matmul(patches_t, w_cm, b, *, emit_preact=False):
    """tanh(W @ patches_T + b): channels on sublanes, M = B*Ho*Wo on lanes.

    patches_t : (K, M)     transposed im2col patches (K = Cin*k*k).
    w_cm      : (Cout, K)  flattened conv weight.
    b         : (Cout,)    bias.
    Returns (Cout_p, M_p)-padded arrays; callers slice [:Cout, :M].
    """
    K, M = patches_t.shape
    Cout, K2 = w_cm.shape
    assert K == K2
    Kp = _round_up(K, 8)
    Cp = _round_up(Cout, 8)
    Mp, tile = _lane_tiling(M)

    p = _pad_to(patches_t.astype(jnp.float32), (Kp, Mp))
    w = _pad_to(w_cm.astype(jnp.float32), (Cp, Kp))
    bb = _pad_to(b.reshape(Cout, 1).astype(jnp.float32), (Cp, 1))

    out_shape = jax.ShapeDtypeStruct((Cp, Mp), jnp.float32)
    out_spec = pl.BlockSpec((Cp, tile), lambda i: (0, i))
    if emit_preact:
        out_shapes, out_specs = (out_shape, out_shape), (out_spec, out_spec)
    else:
        out_shapes, out_specs = out_shape, out_spec

    return pl.pallas_call(
        functools.partial(_conv_t_kernel, emit_preact=emit_preact),
        out_shape=out_shapes,
        grid=(Mp // tile,),
        in_specs=[
            pl.BlockSpec((Cp, Kp), lambda i: (0, 0)),     # weights resident
            pl.BlockSpec((Cp, 1), lambda i: (0, 0)),      # bias resident
            pl.BlockSpec((Kp, tile), lambda i: (0, i)),   # patch lane-tile
        ],
        out_specs=out_specs,
        compiler_params=pltpu.CompilerParams(
            dimension_semantics=("parallel",)),
    )(w, bb, p)


def _tail_kernel(x_ref, w3_ref, b3_ref, w4_ref, b4_ref, w5_ref, b5_ref,
                 logits_ref, probs_ref):
    """conv3 (1x1 spatial => matmul) + tanh + linear1 + tanh + linear2 + softmax."""
    h = jnp.dot(x_ref[...], w3_ref[...], preferred_element_type=jnp.float32)
    h = jnp.tanh(h + b3_ref[...])                              # (tb, 120)
    h = jnp.dot(h, w4_ref[...], preferred_element_type=jnp.float32)
    h = jnp.tanh(h + b4_ref[...])                              # (tb, 84)
    logits = jnp.dot(h, w5_ref[...],
                     preferred_element_type=jnp.float32) + b5_ref[...]
    logits_ref[...] = logits.astype(logits_ref.dtype)
    m = jnp.max(logits, axis=1, keepdims=True)
    e = jnp.exp(logits - m)
    denom = jnp.sum(e, axis=1, keepdims=True)
    probs_ref[...] = (e * pl.reciprocal(denom, approx=True)).astype(probs_ref.dtype)


def fused_tail(x, w3, b3, w4, b4, w5, b5):
    """(B, 400) -> (logits, probs): conv3 + classifier head in one Pallas call."""
    B, K3 = x.shape
    K3b, H3 = w3.shape
    H3b, H4 = w4.shape
    H4b, N = w5.shape
    assert K3 == K3b and H3 == H3b and H4 == H4b

    Bp = _round_up(B, 8)
    tile_b = Bp if Bp <= 128 else 128       # batch-parallel once B grows
    Bp = _round_up(Bp, tile_b)

    xp = _pad_to(x.astype(jnp.float32), (Bp, K3))
    b3 = b3.reshape(1, H3).astype(jnp.float32)
    b4 = b4.reshape(1, H4).astype(jnp.float32)
    b5 = b5.reshape(1, N).astype(jnp.float32)

    logits, probs = pl.pallas_call(
        _tail_kernel,
        out_shape=(jax.ShapeDtypeStruct((Bp, N), jnp.float32),
                   jax.ShapeDtypeStruct((Bp, N), jnp.float32)),
        grid=(Bp // tile_b,),
        in_specs=[
            pl.BlockSpec((tile_b, K3), lambda i: (i, 0)),
            pl.BlockSpec((K3, H3), lambda i: (0, 0)),
            pl.BlockSpec((1, H3), lambda i: (0, 0)),
            pl.BlockSpec((H3, H4), lambda i: (0, 0)),
            pl.BlockSpec((1, H4), lambda i: (0, 0)),
            pl.BlockSpec((H4, N), lambda i: (0, 0)),
            pl.BlockSpec((1, N), lambda i: (0, 0)),
        ],
        out_specs=(pl.BlockSpec((tile_b, N), lambda i: (i, 0)),
                   pl.BlockSpec((tile_b, N), lambda i: (i, 0))),
        compiler_params=pltpu.CompilerParams(
            dimension_semantics=("parallel",)),
    )(xp, w3.astype(jnp.float32), b3, w4.astype(jnp.float32), b4,
      w5.astype(jnp.float32), b5)
    return logits[:B], probs[:B]


# ---------------------------------------------------------------------------
# LeNet5Simulator forward (im2col / avg-pool are thin XLA glue on tiny tensors)
# ---------------------------------------------------------------------------
def lenet5_forward(params, x):
    """x: (B, 1, 32, 32) NCHW float32 -> (logits, probs, simulator)."""
    B = x.shape[0]
    k = 5

    # ---- conv1 (+ tanh1): transposed-patch matmul, emits pre-act + act -----
    x0 = x[:, 0]                                           # (B, 32, 32), Cin=1
    Ho1, Wo1 = 28, 28
    views1 = [x0[:, di:di + Ho1, dj:dj + Wo1]
              for di in range(k) for dj in range(k)]
    patches1_t = jnp.stack(views1, axis=0).reshape(k * k, B * Ho1 * Wo1)
    w1 = params["conv1_w"].reshape(6, k * k)               # (Cout, K), Cin=1
    pre1_t, act1_t = conv_transposed_matmul(
        patches1_t, w1, params["conv1_b"], emit_preact=True)
    M1 = B * Ho1 * Wo1
    pre1 = pre1_t[:6, :M1].reshape(6, B, Ho1, Wo1)
    act1 = act1_t[:6, :M1].reshape(6, B, Ho1, Wo1)

    # TODO(synk): Simulator(...) loads an external model; identity stand-in.
    simulator = jnp.transpose(pre1, (1, 0, 2, 3))          # (B, 6, 28, 28)

    # ---- pool1 + conv2 (+ tanh2) -------------------------------------------
    p1 = act1.reshape(6, B, 14, 2, 14, 2).mean(axis=(3, 5))   # (6, B, 14, 14)
    Ho2, Wo2 = 10, 10
    views2 = [p1[:, :, di:di + Ho2, dj:dj + Wo2]
              for di in range(k) for dj in range(k)]
    patches2_t = jnp.stack(views2, axis=1).reshape(6 * k * k, B * Ho2 * Wo2)
    w2 = params["conv2_w"].reshape(16, 6 * k * k)
    act2_t = conv_transposed_matmul(patches2_t, w2, params["conv2_b"])
    M2 = B * Ho2 * Wo2
    act2 = act2_t[:16, :M2].reshape(16, B, Ho2, Wo2)

    # ---- pool2 + [conv3 + tanh3 + linear1 + tanh4 + linear2 + softmax] -----
    p2 = act2.reshape(16, B, 5, 2, 5, 2).mean(axis=(3, 5))     # (16, B, 5, 5)
    x3 = jnp.transpose(p2, (1, 0, 2, 3)).reshape(B, 16 * 5 * 5)   # (B, 400)
    w3 = params["conv3_w"].reshape(120, 16 * 5 * 5).T             # (400, 120)
    logits, probs = fused_tail(
        x3, w3, params["conv3_b"],
        params["lin1_w"], params["lin1_b"],
        params["lin2_w"], params["lin2_b"])
    return logits, probs, simulator


# ---------------------------------------------------------------------------
# Parameters and pure-JAX reference
# ---------------------------------------------------------------------------
def init_params(n_classes, key):
    ks = jax.random.split(key, 10)
    scale = 0.1

    def w(k, shape):
        return (scale * jax.random.normal(k, shape)).astype(jnp.float32)

    return {
        "conv1_w": w(ks[0], (6, 1, 5, 5)),
        "conv1_b": w(ks[1], (6,)),
        "conv2_w": w(ks[2], (16, 6, 5, 5)),
        "conv2_b": w(ks[3], (16,)),
        "conv3_w": w(ks[4], (120, 16, 5, 5)),
        "conv3_b": w(ks[5], (120,)),
        "lin1_w": w(ks[6], (120, 84)),      # stored as (in, out)
        "lin1_b": w(ks[7], (84,)),
        "lin2_w": w(ks[8], (84, n_classes)),
        "lin2_b": w(ks[9], (n_classes,)),
    }


def lenet5_reference(params, x):
    """Pure-JAX f32 reference mirroring the PyTorch module."""
    def conv(h, w, b):
        y = lax.conv_general_dilated(h, w, (1, 1), "VALID",
                                     dimension_numbers=("NCHW", "OIHW", "NCHW"))
        return y + b.reshape(1, -1, 1, 1)

    def pool(h):
        B, C, H, W = h.shape
        return h.reshape(B, C, H // 2, 2, W // 2, 2).mean(axis=(3, 5))

    c1 = conv(x, params["conv1_w"], params["conv1_b"])
    sim = c1
    h = pool(jnp.tanh(sim))
    h = pool(jnp.tanh(conv(h, params["conv2_w"], params["conv2_b"])))
    h = jnp.tanh(conv(h, params["conv3_w"], params["conv3_b"]))
    h = h.reshape(h.shape[0], -1)
    h = jnp.tanh(h @ params["lin1_w"] + params["lin1_b"])
    logits = h @ params["lin2_w"] + params["lin2_b"]
    probs = jax.nn.softmax(logits, axis=1)
    return logits, probs, sim


if __name__ == "__main__":
    n_classes = 10
    key = jax.random.PRNGKey(0)
    k_params, k_x = jax.random.split(key)
    params = init_params(n_classes, k_params)
    # LeNet5 geometry requires 32x32 single-channel input.
    x = jax.random.normal(k_x, (2, 1, 32, 32), dtype=jnp.float32)

    logits, probs, simulator = jax.jit(lenet5_forward)(params, x)
    jax.block_until_ready((logits, probs, simulator))

    assert logits.shape == (2, n_classes)
    assert probs.shape == (2, n_classes)
    assert simulator.shape == (2, 6, 28, 28)
    assert bool(jnp.all(jnp.isfinite(logits)))
    assert bool(jnp.all(jnp.isfinite(probs)))
    assert bool(jnp.allclose(jnp.sum(probs, axis=1), 1.0, atol=1e-2))

    # Cross-check against a pure-JAX f32 reference (MXU matmul rounding +
    # approx softmax reciprocal -> keep a conservative tolerance).
    ref_logits, ref_probs, ref_sim = jax.jit(lenet5_reference)(params, x)
    assert bool(jnp.allclose(simulator, ref_sim, atol=5e-2))
    assert bool(jnp.allclose(logits, ref_logits, atol=5e-2))
    assert bool(jnp.allclose(probs, ref_probs, atol=5e-2))

    print("KERNEL_OK")
</pallas_src>

<mosaic_0001>
module attributes {stable_mosaic.version = 11 : i64} {
  func.func @_conv_t_kernel(%arg0: i32, %arg1: memref<8x32xf32, #tpu.memory_space<vmem>>, %arg2: memref<8x1xf32, #tpu.memory_space<vmem>>, %arg3: memref<32x896xf32, #tpu.memory_space<vmem>>, %arg4: memref<8x896xf32, #tpu.memory_space<vmem>>, %arg5: memref<8x896xf32, #tpu.memory_space<vmem>>) attributes {dimension_semantics = [#tpu.dimension_semantics<parallel>], iteration_bounds = array<i64: 2>, scalar_prefetch = 0 : i64, scratch_operands = 0 : i64, tpu.core_type = #tpu.core_type<tc>, window_params = [{pipeline_mode = #tpu.pipeline_mode<synchronous>, transform_indices = @transform_0, window_bounds = array<i64: 8, 32>}, {pipeline_mode = #tpu.pipeline_mode<synchronous>, transform_indices = @transform_1, window_bounds = array<i64: 8, 1>}, {transform_indices = @transform_2, window_bounds = array<i64: 32, 896>}, {transform_indices = @transform_3, window_bounds = array<i64: 8, 896>}, {transform_indices = @transform_4, window_bounds = array<i64: 8, 896>}]} {
    %c0 = arith.constant 0 : index
    %c0_0 = arith.constant 0 : index
    %0 = vector.load %arg1[%c0, %c0_0] : memref<8x32xf32, #tpu.memory_space<vmem>>, vector<8x32xf32>
    %c0_1 = arith.constant 0 : index
    %c0_2 = arith.constant 0 : index
    %1 = vector.load %arg3[%c0_1, %c0_2] : memref<32x896xf32, #tpu.memory_space<vmem>>, vector<32x896xf32>
    %cst = arith.constant dense<0.000000e+00> : vector<8x896xf32>
    %2 = tpu.matmul %0, %1, %cst {dimension_numbers = #tpu.dot_dimension_numbers<[1], [0], [0], [1], [0, 0, 1, 1], [], []>} : vector<8x32xf32>, vector<32x896xf32>, vector<8x896xf32> -> vector<8x896xf32>
    %c0_3 = arith.constant 0 : index
    %c0_4 = arith.constant 0 : index
    %3 = vector.load %arg2[%c0_3, %c0_4] : memref<8x1xf32, #tpu.memory_space<vmem>>, vector<8x1xf32>
    %4 = vector.broadcast %3 : vector<8x1xf32> to vector<8x896xf32>
    %5 = arith.addf %2, %4 : vector<8x896xf32>
    %c0_5 = arith.constant 0 : index
    %c0_6 = arith.constant 0 : index
    %6 = vector.load %arg4[%c0_5, %c0_6] : memref<8x896xf32, #tpu.memory_space<vmem>>, vector<8x896xf32>
    tpu.vector_store %arg4[%c0_5, %c0_6], %5 {strides = array<i32>} : memref<8x896xf32, #tpu.memory_space<vmem>>, vector<8x896xf32>,
    %7 = math.tanh %5 : vector<8x896xf32>
    %c0_7 = arith.constant 0 : index
    %c0_8 = arith.constant 0 : index
    %8 = vector.load %arg5[%c0_7, %c0_8] : memref<8x896xf32, #tpu.memory_space<vmem>>, vector<8x896xf32>
    tpu.vector_store %arg5[%c0_7, %c0_8], %7 {strides = array<i32>} : memref<8x896xf32, #tpu.memory_space<vmem>>, vector<8x896xf32>,
    return
  }
  func.func @transform_0(%arg0: i32) -> (i32, i32) {
    %c0_i32 = arith.constant 0 : i32
    %c0_i32_0 = arith.constant 0 : i32
    %c0_i32_1 = arith.constant 0 : i32
    return %c0_i32, %c0_i32_0 : i32, i32
  }
  func.func @transform_1(%arg0: i32) -> (i32, i32) {
    %c0_i32 = arith.constant 0 : i32
    %c0_i32_0 = arith.constant 0 : i32
    %c0_i32_1 = arith.constant 0 : i32
    return %c0_i32, %c0_i32_0 : i32, i32
  }
  func.func @transform_2(%arg0: i32) -> (i32, i32) {
    %c0_i32 = arith.constant 0 : i32
    %c0_i32_0 = arith.constant 0 : i32
    return %c0_i32, %arg0 : i32, i32
  }
  func.func @transform_3(%arg0: i32) -> (i32, i32) {
    %c0_i32 = arith.constant 0 : i32
    %c0_i32_0 = arith.constant 0 : i32
    return %c0_i32, %arg0 : i32, i32
  }
  func.func @transform_4(%arg0: i32) -> (i32, i32) {
    %c0_i32 = arith.constant 0 : i32
    %c0_i32_0 = arith.constant 0 : i32
    return %c0_i32, %arg0 : i32, i32
  }
}

module attributes {stable_mosaic.version = 11 : i64} {
  func.func @_conv_t_kernel(%arg0: i32, %arg1: memref<16x152xf32, #tpu.memory_space<vmem>>, %arg2: memref<16x1xf32, #tpu.memory_space<vmem>>, %arg3: memref<152x128xf32, #tpu.memory_space<vmem>>, %arg4: memref<16x128xf32, #tpu.memory_space<vmem>>) attributes {dimension_semantics = [#tpu.dimension_semantics<parallel>], iteration_bounds = array<i64: 2>, scalar_prefetch = 0 : i64, scratch_operands = 0 : i64, tpu.core_type = #tpu.core_type<tc>, window_params = [{pipeline_mode = #tpu.pipeline_mode<synchronous>, transform_indices = @transform_0, window_bounds = array<i64: 16, 152>}, {pipeline_mode = #tpu.pipeline_mode<synchronous>, transform_indices = @transform_1, window_bounds = array<i64: 16, 1>}, {transform_indices = @transform_2, window_bounds = array<i64: 152, 128>}, {transform_indices = @transform_3, window_bounds = array<i64: 16, 128>}]} {
    %c0 = arith.constant 0 : index
    %c0_0 = arith.constant 0 : index
    %0 = vector.load %arg1[%c0, %c0_0] : memref<16x152xf32, #tpu.memory_space<vmem>>, vector<16x152xf32>
    %c0_1 = arith.constant 0 : index
    %c0_2 = arith.constant 0 : index
    %1 = vector.load %arg3[%c0_1, %c0_2] : memref<152x128xf32, #tpu.memory_space<vmem>>, vector<152x128xf32>
    %cst = arith.constant dense<0.000000e+00> : vector<16x128xf32>
    %2 = tpu.matmul %0, %1, %cst {dimension_numbers = #tpu.dot_dimension_numbers<[1], [0], [0], [1], [0, 0, 1, 1], [], []>} : vector<16x152xf32>, vector<152x128xf32>, vector<16x128xf32> -> vector<16x128xf32>
    %c0_3 = arith.constant 0 : index
    %c0_4 = arith.constant 0 : index
    %3 = vector.load %arg2[%c0_3, %c0_4] : memref<16x1xf32, #tpu.memory_space<vmem>>, vector<16x1xf32>
    %4 = vector.broadcast %3 : vector<16x1xf32> to vector<16x128xf32>
    %5 = arith.addf %2, %4 : vector<16x128xf32>
    %6 = math.tanh %5 : vector<16x128xf32>
    %c0_5 = arith.constant 0 : index
    %c0_6 = arith.constant 0 : index
    %7 = vector.load %arg4[%c0_5, %c0_6] : memref<16x128xf32, #tpu.memory_space<vmem>>, vector<16x128xf32>
    tpu.vector_store %arg4[%c0_5, %c0_6], %6 {strides = array<i32>} : memref<16x128xf32, #tpu.memory_space<vmem>>, vector<16x128xf32>,
    return
  }
  func.func @transform_0(%arg0: i32) -> (i32, i32) {
    %c0_i32 = arith.constant 0 : i32
    %c0_i32_0 = arith.constant 0 : i32
    %c0_i32_1 = arith.constant 0 : i32
    return %c0_i32, %c0_i32_0 : i32, i32
  }
  func.func @transform_1(%arg0: i32) -> (i32, i32) {
    %c0_i32 = arith.constant 0 : i32
    %c0_i32_0 = arith.constant 0 : i32
    %c0_i32_1 = arith.constant 0 : i32
    return %c0_i32, %c0_i32_0 : i32, i32
  }
  func.func @transform_2(%arg0: i32) -> (i32, i32) {
    %c0_i32 = arith.constant 0 : i32
    %c0_i32_0 = arith.constant 0 : i32
    return %c0_i32, %arg0 : i32, i32
  }
  func.func @transform_3(%arg0: i32) -> (i32, i32) {
    %c0_i32 = arith.constant 0 : i32
    %c0_i32_0 = arith.constant 0 : i32
    return %c0_i32, %arg0 : i32, i32
  }
}

module attributes {stable_mosaic.version = 11 : i64} {
  func.func @_tail_kernel(%arg0: i32, %arg1: memref<8x400xf32, #tpu.memory_space<vmem>>, %arg2: memref<400x120xf32, #tpu.memory_space<vmem>>, %arg3: memref<1x120xf32, #tpu.memory_space<vmem>>, %arg4: memref<120x84xf32, #tpu.memory_space<vmem>>, %arg5: memref<1x84xf32, #tpu.memory_space<vmem>>, %arg6: memref<84x10xf32, #tpu.memory_space<vmem>>, %arg7: memref<1x10xf32, #tpu.memory_space<vmem>>, %arg8: memref<8x10xf32, #tpu.memory_space<vmem>>, %arg9: memref<8x10xf32, #tpu.memory_space<vmem>>) attributes {dimension_semantics = [#tpu.dimension_semantics<parallel>], iteration_bounds = array<i64: 1>, scalar_prefetch = 0 : i64, scratch_operands = 0 : i64, tpu.core_type = #tpu.core_type<tc>, window_params = [{transform_indices = @transform_0, window_bounds = array<i64: 8, 400>}, {pipeline_mode = #tpu.pipeline_mode<synchronous>, transform_indices = @transform_1, window_bounds = array<i64: 400, 120>}, {pipeline_mode = #tpu.pipeline_mode<synchronous>, transform_indices = @transform_2, window_bounds = array<i64: 1, 120>}, {pipeline_mode = #tpu.pipeline_mode<synchronous>, transform_indices = @transform_3, window_bounds = array<i64: 120, 84>}, {pipeline_mode = #tpu.pipeline_mode<synchronous>, transform_indices = @transform_4, window_bounds = array<i64: 1, 84>}, {pipeline_mode = #tpu.pipeline_mode<synchronous>, transform_indices = @transform_5, window_bounds = array<i64: 84, 10>}, {pipeline_mode = #tpu.pipeline_mode<synchronous>, transform_indices = @transform_6, window_bounds = array<i64: 1, 10>}, {transform_indices = @transform_7, window_bounds = array<i64: 8, 10>}, {transform_indices = @transform_8, window_bounds = array<i64: 8, 10>}]} {
    %c0 = arith.constant 0 : index
    %c0_0 = arith.constant 0 : index
    %0 = vector.load %arg1[%c0, %c0_0] : memref<8x400xf32, #tpu.memory_space<vmem>>, vector<8x400xf32>
    %c0_1 = arith.constant 0 : index
    %c0_2 = arith.constant 0 : index
    %1 = vector.load %arg2[%c0_1, %c0_2] : memref<400x120xf32, #tpu.memory_space<vmem>>, vector<400x120xf32>
    %cst = arith.constant dense<0.000000e+00> : vector<8x120xf32>
    %2 = tpu.matmul %0, %1, %cst {dimension_numbers = #tpu.dot_dimension_numbers<[1], [0], [0], [1], [0, 0, 1, 1], [], []>} : vector<8x400xf32>, vector<400x120xf32>, vector<8x120xf32> -> vector<8x120xf32>
    %c0_3 = arith.constant 0 : index
    %c0_4 = arith.constant 0 : index
    %3 = vector.load %arg3[%c0_3, %c0_4] : memref<1x120xf32, #tpu.memory_space<vmem>>, vector<1x120xf32>
    %4 = vector.broadcast %3 : vector<1x120xf32> to vector<8x120xf32>
    %5 = arith.addf %2, %4 : vector<8x120xf32>
    %6 = math.tanh %5 : vector<8x120xf32>
    %c0_5 = arith.constant 0 : index
    %c0_6 = arith.constant 0 : index
    %7 = vector.load %arg4[%c0_5, %c0_6] : memref<120x84xf32, #tpu.memory_space<vmem>>, vector<120x84xf32>
    %cst_7 = arith.constant dense<0.000000e+00> : vector<8x84xf32>
    %8 = tpu.matmul %6, %7, %cst_7 {dimension_numbers = #tpu.dot_dimension_numbers<[1], [0], [0], [1], [0, 0, 1, 1], [], []>} : vector<8x120xf32>, vector<120x84xf32>, vector<8x84xf32> -> vector<8x84xf32>
    %c0_8 = arith.constant 0 : index
    %c0_9 = arith.constant 0 : index
    %9 = vector.load %arg5[%c0_8, %c0_9] : memref<1x84xf32, #tpu.memory_space<vmem>>, vector<1x84xf32>
    %10 = vector.broadcast %9 : vector<1x84xf32> to vector<8x84xf32>
    %11 = arith.addf %8, %10 : vector<8x84xf32>
    %12 = math.tanh %11 : vector<8x84xf32>
    %c0_10 = arith.constant 0 : index
    %c0_11 = arith.constant 0 : index
    %13 = vector.load %arg6[%c0_10, %c0_11] : memref<84x10xf32, #tpu.memory_space<vmem>>, vector<84x10xf32>
    %cst_12 = arith.constant dense<0.000000e+00> : vector<8x10xf32>
    %14 = tpu.matmul %12, %13, %cst_12 {dimension_numbers = #tpu.dot_dimension_numbers<[1], [0], [0], [1], [0, 0, 1, 1], [], []>} : vector<8x84xf32>, vector<84x10xf32>, vector<8x10xf32> -> vector<8x10xf32>
    %c0_13 = arith.constant 0 : index
    %c0_14 = arith.constant 0 : index
    %15 = vector.load %arg7[%c0_13, %c0_14] : memref<1x10xf32, #tpu.memory_space<vmem>>, vector<1x10xf32>
    %16 = vector.broadcast %15 : vector<1x10xf32> to vector<8x10xf32>
    %17 = arith.addf %14, %16 : vector<8x10xf32>
    %c0_15 = arith.constant 0 : index
    %c0_16 = arith.constant 0 : index
    %18 = vector.load %arg8[%c0_15, %c0_16] : memref<8x10xf32, #tpu.memory_space<vmem>>, vector<8x10xf32>
    tpu.vector_store %arg8[%c0_15, %c0_16], %17 {strides = array<i32>} : memref<8x10xf32, #tpu.memory_space<vmem>>, vector<8x10xf32>,
    %cst_17 = arith.constant dense<0xFF800000> : vector<8xf32>
    %19 = vector.multi_reduction <maximumf>, %17, %cst_17 [1] : vector<8x10xf32> to vector<8xf32>
    %20 = vector.shape_cast %19 : vector<8xf32> to vector<8x1xf32>
    %21 = vector.broadcast %20 : vector<8x1xf32> to vector<8x10xf32>
    %22 = arith.subf %17, %21 : vector<8x10xf32>
    %23 = math.exp %22 : vector<8x10xf32>
    %cst_18 = arith.constant dense<0.000000e+00> : vector<8xf32>
    %24 = vector.multi_reduction <add>, %23, %cst_18 [1] : vector<8x10xf32> to vector<8xf32>
    %25 = vector.shape_cast %24 : vector<8xf32> to vector<8x1xf32>
    %26 = tpu.reciprocal %25 {approx = true} : vector<8x1xf32> -> vector<8x1xf32>
    %27 = vector.broadcast %26 : vector<8x1xf32> to vector<8x10xf32>
    %28 = arith.mulf %23, %27 : vector<8x10xf32>
    %c0_19 = arith.constant 0 : index
    %c0_20 = arith.constant 0 : index
    %29 = vector.load %arg9[%c0_19, %c0_20] : memref<8x10xf32, #tpu.memory_space<vmem>>, vector<8x10xf32>
    tpu.vector_store %arg9[%c0_19, %c0_20], %28 {strides = array<i32>} : memref<8x10xf32, #tpu.memory_space<vmem>>, vector<8x10xf32>,
    return
  }
  func.func @transform_0(%arg0: i32) -> (i32, i32) {
    %c0_i32 = arith.constant 0 : i32
    %c0_i32_0 = arith.constant 0 : i32
    return %arg0, %c0_i32 : i32, i32
  }
  func.func @transform_1(%arg0: i32) -> (i32, i32) {
    %c0_i32 = arith.constant 0 : i32
    %c0_i32_0 = arith.constant 0 : i32
    %c0_i32_1 = arith.constant 0 : i32
    return %c0_i32, %c0_i32_0 : i32, i32
  }
  func.func @transform_2(%arg0: i32) -> (i32, i32) {
    %c0_i32 = arith.constant 0 : i32
    %c0_i32_0 = arith.constant 0 : i32
    %c0_i32_1 = arith.constant 0 : i32
    return %c0_i32, %c0_i32_0 : i32, i32
  }
  func.func @transform_3(%arg0: i32) -> (i32, i32) {
    %c0_i32 = arith.constant 0 : i32
    %c0_i32_0 = arith.constant 0 : i32
    %c0_i32_1 = arith.constant 0 : i32
    return %c0_i32, %c0_i32_0 : i32, i32
  }
  func.func @transform_4(%arg0: i32) -> (i32, i32) {
    %c0_i32 = arith.constant 0 : i32
    %c0_i32_0 = arith.constant 0 : i32
    %c0_i32_1 = arith.constant 0 : i32
    return %c0_i32, %c0_i32_0 : i32, i32
  }
  func.func @transform_5(%arg0: i32) -> (i32, i32) {
    %c0_i32 = arith.constant 0 : i32
    %c0_i32_0 = arith.constant 0 : i32
    %c0_i32_1 = arith.constant 0 : i32
    return %c0_i32, %c0_i32_0 : i32, i32
  }
  func.func @transform_6(%arg0: i32) -> (i32, i32) {
    %c0_i32 = arith.constant 0 : i32
    %c0_i32_0 = arith.constant 0 : i32
    %c0_i32_1 = arith.constant 0 : i32
    return %c0_i32, %c0_i32_0 : i32, i32
  }
  func.func @transform_7(%arg0: i32) -> (i32, i32) {
    %c0_i32 = arith.constant 0 : i32
    %c0_i32_0 = arith.constant 0 : i32
    return %arg0, %c0_i32 : i32, i32
  }
  func.func @transform_8(%arg0: i32) -> (i32, i32) {
    %c0_i32 = arith.constant 0 : i32
    %c0_i32_0 = arith.constant 0 : i32
    return %arg0, %c0_i32 : i32, i32
  }
}

</mosaic_0001>

<llo_original>
// kernel: lenet5_forward.3
$region0: #{lenet5_forward.3}
  #allocation0 [shape = 'u32[]', space=smem, size = 0x4, offset = 0x4, fixed_abs, tag = 'smem constant byte address 0x4 - core index']
  #allocation1 [shape = 'u32[144,128]{1,0:T(1,128)}', space=vmem, size = 0x12000, scoped, tag = 'internal scratch']
  %s0 = inlined_call_operand.vmem [shape: f32[8,32], index: 0, kind: input, shape index: {}]
  %s1 = inlined_call_operand.vmem [shape: f32[8,1], index: 1, kind: input, shape index: {}]
  %s2 = inlined_call_operand.vmem [shape: f32[32,1792], index: 2, kind: input, shape index: {}]
  %s3 = inlined_call_operand.vmem [shape: f32[8,1792], index: 3, kind: output, shape index: {0}]
  %s4 = inlined_call_operand.vmem [shape: f32[8,1792], index: 4, kind: output, shape index: {1}]
  %5 = xla_tuple %s3, %s4
  %s6 = sld [smem:[#allocation0]]
  $region76: #{lenet5_forward.3} parent=0
    _
  %s8 = ssub.s32 1, %s6
  %s9 = scalar_select 0, %s8, %s6
  $region1: #{lenet5_forward.3} parent=0
    #allocation2 [shape = 'u8[229376]{0}', space=vmem, size = 0x38000, scoped, tag = 'input window, operand 2']
    loop: start=0, step=1, limit=4
    $region2: #{lenet5_forward.3} parent=1 // loop_pre_header
      _
    $region3: #{lenet5_forward.3} parent=1 // loop_header
      %s11 = sphi 0, %s15
      %p12 = scmp.ge.s32.totalorder %s11, 4
      %s19 = sphi 0, %s19
      %s21 = sphi 0, %s19
      %s22 = sphi 0, %s21
      %s36 = sphi 0, %s22
      %s40 = sphi 0, %s40
      %s42 = sphi 0, %s40
      %s43 = sphi 0, %s42
      %s57 = sphi 0, %s43
      %s63 = sphi 0, %s65
      %s66 = sphi 0, %s63
      %s67 = sphi 0, %s66
      %s83 = sphi 0, %s67
      %s89 = sphi 0, %s91
      %s92 = sphi 0, %s89
      %s93 = sphi 0, %s92
      %s109 = sphi 0, %s93
      %s115 = sphi 0, %s117
      %s118 = sphi 0, %s115
      %s119 = sphi 0, %s118
      %s135 = sphi 0, %s119
    $region4: #{lenet5_forward.3} parent=1 // loop_header_branch
      %14 = sbr.rel (%p12) target = $region8
    $region5: #{lenet5_forward.3} parent=1 // loop_body
      %s16 = ssub.s32 %s11, 1
      %s17 = ssub.s32 %s11, 2
      %s18 = sadd.s32 %s11, 1
      %s20 = sadd.s32 %s19, 1
      %p23 = scmp.eq.s32.totalorder %s11, 1
      %p24 = scmp.ne.s32.totalorder %s19, %s21
      %p25 = scmp.eq.s32.totalorder %s11, 0
      %p26 = por %p24, %p25
      %p27 = scmp.ne.s32.totalorder %s19, %s21
      %p28 = scmp.eq.s32.totalorder %s16, 1
      %p29 = por %p27, %p28
      %p30 = scmp.ne.s32.totalorder %s21, %s22
      %p31 = scmp.eq.s32.totalorder %s16, 0
      %p32 = por %p30, %p31
      %p33 = scmp.ne.s32.totalorder %s21, %s22
      %p34 = scmp.eq.s32.totalorder %s17, 1
      %p35 = por %p33, %p34
      %p37 = scmp.ne.s32.totalorder %s22, %s36
      %p38 = scmp.eq.s32.totalorder %s17, 0
      %p39 = por %p37, %p38
      %s41 = sadd.s32 %s40, 1
      %p44 = scmp.eq.s32.totalorder %s11, 1
      %p45 = scmp.ne.s32.totalorder %s40, %s42
      %p46 = scmp.eq.s32.totalorder %s11, 0
      %p47 = por %p45, %p46
      %p48 = scmp.ne.s32.totalorder %s40, %s42
      %p49 = scmp.eq.s32.totalorder %s16, 1
      %p50 = por %p48, %p49
      %p51 = scmp.ne.s32.totalorder %s42, %s43
      %p52 = scmp.eq.s32.totalorder %s16, 0
      %p53 = por %p51, %p52
      %p54 = scmp.ne.s32.totalorder %s42, %s43
      %p55 = scmp.eq.s32.totalorder %s17, 1
      %p56 = por %p54, %p55
      %p58 = scmp.ne.s32.totalorder %s43, %s57
      %p59 = scmp.eq.s32.totalorder %s17, 0
      %p60 = por %p58, %p59
      %s61 = ssub.s32 %s11, %s18
      %p62 = scmp.eq.s32.totalorder %s61, 0
      %s64 = sadd.s32 %s63, 1
      %s65 = scalar_select %p62, %s63, %s64
      %p68 = pneg %p62
      %p69 = scmp.eq.s32.totalorder %s11, 1
      %p70 = por %p68, %p69
      %p71 = scmp.ne.s32.totalorder %s63, %s66
      %p72 = scmp.eq.s32.totalorder %s11, 0
      %p73 = por %p71, %p72
      %p74 = scmp.ne.s32.totalorder %s63, %s66
      %p75 = scmp.eq.s32.totalorder %s16, 1
      %p76 = por %p74, %p75
      %p77 = scmp.ne.s32.totalorder %s66, %s67
      %p78 = scmp.eq.s32.totalorder %s16, 0
      %p79 = por %p77, %p78
      %p80 = scmp.ne.s32.totalorder %s66, %s67
      %p81 = scmp.eq.s32.totalorder %s17, 1
      %p82 = por %p80, %p81
      %p84 = scmp.ne.s32.totalorder %s67, %s83
      %p85 = scmp.eq.s32.totalorder %s17, 0
      %p86 = por %p84, %p85
      %s87 = ssub.s32 %s11, %s18
      %p88 = scmp.eq.s32.totalorder %s87, 0
      %s90 = sadd.s32 %s89, 1
      %s91 = scalar_select %p88, %s89, %s90
      %p94 = pneg %p88
      %p95 = scmp.eq.s32.totalorder %s11, 1
      %p96 = por %p94, %p95
      %p97 = scmp.ne.s32.totalorder %s89, %s92
      %p98 = scmp.eq.s32.totalorder %s11, 0
      %p99 = por %p97, %p98
      %p100 = scmp.ne.s32.totalorder %s89, %s92
      %p101 = scmp.eq.s32.totalorder %s16, 1
      %p102 = por %p100, %p101
      %p103 = scmp.ne.s32.totalorder %s92, %s93
      %p104 = scmp.eq.s32.totalorder %s16, 0
      %p105 = por %p103, %p104
      %p106 = scmp.ne.s32.totalorder %s92, %s93
      %p107 = scmp.eq.s32.totalorder %s17, 1
      %p108 = por %p106, %p107
      %p110 = scmp.ne.s32.totalorder %s93, %s109
      %p111 = scmp.eq.s32.totalorder %s17, 0
      %p112 = por %p110, %p111
      %s113 = ssub.s32 %s11, %s18
      %p114 = scmp.eq.s32.totalorder %s113, 0
      %s116 = sadd.s32 %s115, 1
      %s117 = scalar_select %p114, %s115, %s116
      %p120 = pneg %p114
      %p121 = scmp.eq.s32.totalorder %s11, 1
      %p122 = por %p120, %p121
      %p123 = scmp.ne.s32.totalorder %s115, %s118
      %p124 = scmp.eq.s32.totalorder %s11, 0
      %p125 = por %p123, %p124
      %p126 = scmp.ne.s32.totalorder %s115, %s118
      %p127 = scmp.eq.s32.totalorder %s16, 1
      %p128 = por %p126, %p127
      %p129 = scmp.ne.s32.totalorder %s118, %s119
      %p130 = scmp.eq.s32.totalorder %s16, 0
      %p131 = por %p129, %p130
      %p132 = scmp.ne.s32.totalorder %s118, %s119
      %p133 = scmp.eq.s32.totalorder %s17, 1
      %p134 = por %p132, %p133
      %p136 = scmp.ne.s32.totalorder %s119, %s135
      %p137 = scmp.eq.s32.totalorder %s17, 0
      %p138 = por %p136, %p137
      %p139 = scmp.le.s32.totalorder 1, %s11
      %p140 = scmp.lt.s32.totalorder %s11, 3
      %p141 = pnand %p139, %p140
      %p142 = pneg %p141
      // Predicated region
      $region9: #{lenet5_forward.3} parent=5 // pred_check
        _
      $region10: #{lenet5_forward.3} parent=5 // pred_check_branch
        %144 = sbr.rel (%p141) target = $region12
      $region11: #{lenet5_forward.3} parent=5 // pred_region
        %s145 = ssub.s32 %s11, 1
        // Predicated region
        $region13: #{lenet5_forward.3} parent=11 // pred_check
          %p146 = pneg %p32
        $region14: #{lenet5_forward.3} parent=11 // pred_check_branch
          %148 = sbr.rel (%p146) target = $region16
        $region15: #{lenet5_forward.3} parent=11 // pred_region
          _
        $region16: #{lenet5_forward.3} parent=11 // pred_fallthru
          _
        // Predicated region
        $region17: #{lenet5_forward.3} parent=11 // pred_check
          %p149 = pneg %p53
        $region18: #{lenet5_forward.3} parent=11 // pred_check_branch
          %151 = sbr.rel (%p149) target = $region20
        $region19: #{lenet5_forward.3} parent=11 // pred_region
          _
        $region20: #{lenet5_forward.3} parent=11 // pred_fallthru
          _
      $region12: #{lenet5_forward.3} parent=5 // pred_fallthru
        _
      %p152 = scmp.lt.s32.totalorder %s11, 2
      // Predicated region
      $region21: #{lenet5_forward.3} parent=5 // pred_check
        %p153 = pneg %p152
      $region22: #{lenet5_forward.3} parent=5 // pred_check_branch
        %155 = sbr.rel (%p153) target = $region24
      $region23: #{lenet5_forward.3} parent=5 // pred_region
        // Predicated region
        $region25: #{lenet5_forward.3} parent=23 // pred_check
          %p156 = pneg %p73
        $region26: #{lenet5_forward.3} parent=23 // pred_check_branch
          %158 = sbr.rel (%p156) target = $region28
        $region27: #{lenet5_forward.3} parent=23 // pred_region
          %s159 = sand.u32 %s63, 1
          %s160 = sand.u32 %s63, 1
          %s161 = smul.addr %s160, 224
          %s162 = scalar_lea.vmem [#allocation2], %s161
          %s163 = smul.u32 7, %s11
          %s164 = smul.addr %s163, 8
          %s165 = scalar_lea.vmem %s2, %s164
          // Predicated region
          $region29: #{lenet5_forward.3} parent=27 // pred_check
            _
          $region30: #{lenet5_forward.3} parent=27 // pred_check_branch
            %167 = sbr.rel (0) target = $region32
          $region31: #{lenet5_forward.3} parent=27 // pred_region
            // Predicated region
            $region33: #{lenet5_forward.3} parent=31 // pred_check
              _
            $region34: #{lenet5_forward.3} parent=31 // pred_check_branch
              %169 = sbr.rel (0) target = $region36
            $region35: #{lenet5_forward.3} parent=31 // pred_region
              loop: start=0, step=1, limit=1
              $region37: #{lenet5_forward.3} parent=35 // loop_pre_header
                _
              $region38: #{lenet5_forward.3} parent=35 // loop_header
                %s171 = sphi 0, %s175
                %p172 = scmp.ge.s32.totalorder %s171, 1
                %s176 = sphi %s165, %s165
                %s177 = sphi %s162, %s162
              $region39: #{lenet5_forward.3} parent=35 // loop_header_branch
                %174 = sbr.rel (%p172) target = $region43
              $region40: #{lenet5_forward.3} parent=35 // loop_body
                %v178 = vld [vmem:[%s176] sm:$0xff]
                %179 = vst [vmem:[%s177] sm:$0xff] %v178
                %v180 = vld [vmem:[%s176 + $0x8] sm:$0xff]
                %181 = vst [vmem:[%s177 + $0x8] sm:$0xff] %v180
                %v182 = vld [vmem:[%s176 + $0x10] sm:$0xff]
                %183 = vst [vmem:[%s177 + $0x10] sm:$0xff] %v182
                %v184 = vld [vmem:[%s176 + $0x18] sm:$0xff]
                %185 = vst [vmem:[%s177 + $0x18] sm:$0xff] %v184
                %v186 = vld [vmem:[%s176 + $0x20] sm:$0xff]
                %187 = vst [vmem:[%s177 + $0x20] sm:$0xff] %v186
                %v188 = vld [vmem:[%s176 + $0x28] sm:$0xff]
                %189 = vst [vmem:[%s177 + $0x28] sm:$0xff] %v188
                %v190 = vld [vmem:[%s176 + $0x30] sm:$0xff]
                %191 = vst [vmem:[%s177 + $0x30] sm:$0xff] %v190
                %v192 = vld [vmem:[%s176 + $0x70] sm:$0xff]
                %193 = vst [vmem:[%s177 + $0x38] sm:$0xff] %v192
                %v194 = vld [vmem:[%s176 + $0x78] sm:$0xff]
                %195 = vst [vmem:[%s177 + $0x40] sm:$0xff] %v194
                %v196 = vld [vmem:[%s176 + $0x80] sm:$0xff]
                %197 = vst [vmem:[%s177 + $0x48] sm:$0xff] %v196
                %v198 = vld [vmem:[%s176 + $0x88] sm:$0xff]
                %199 = vst [vmem:[%s177 + $0x50] sm:$0xff] %v198
                %v200 = vld [vmem:[%s176 + $0x90] sm:$0xff]
                %201 = vst [vmem:[%s177 + $0x58] sm:$0xff] %v200
                %v202 = vld [vmem:[%s176 + $0x98] sm:$0xff]
                %203 = vst [vmem:[%s177 + $0x60] sm:$0xff] %v202
                %v204 = vld [vmem:[%s176 + $0xa0] sm:$0xff]
                %205 = vst [vmem:[%s177 + $0x68] sm:$0xff] %v204
                %v206 = vld [vmem:[%s176 + $0xe0] sm:$0xff]
                %207 = vst [vmem:[%s177 + $0x70] sm:$0xff] %v206
                %v208 = vld [vmem:[%s176 + $0xe8] sm:$0xff]
                %209 = vst [vmem:[%s177 + $0x78] sm:$0xff] %v208
                %v210 = vld [vmem:[%s176 + $0xf0] sm:$0xff]
                %211 = vst [vmem:[%s177 + $0x80] sm:$0xff] %v210
                %v212 = vld [vmem:[%s176 + $0xf8] sm:$0xff]
                %213 = vst [vmem:[%s177 + $0x88] sm:$0xff] %v212
                %v214 = vld [vmem:[%s176 + $0x100] sm:$0xff]
                %215 = vst [vmem:[%s177 + $0x90] sm:$0xff] %v214
                %v216 = vld [vmem:[%s176 + $0x108] sm:$0xff]
                %217 = vst [vmem:[%s177 + $0x98] sm:$0xff] %v216
                %v218 = vld [vmem:[%s176 + $0x110] sm:$0xff]
                %219 = vst [vmem:[%s177 + $0xa0] sm:$0xff] %v218
                %v220 = vld [vmem:[%s176 + $0x150] sm:$0xff]
                %221 = vst [vmem:[%s177 + $0xa8] sm:$0xff] %v220
                %v222 = vld [vmem:[%s176 + $0x158] sm:$0xff]
                %223 = vst [vmem:[%s177 + $0xb0] sm:$0xff] %v222
                %v224 = vld [vmem:[%s176 + $0x160] sm:$0xff]
                %225 = vst [vmem:[%s177 + $0xb8] sm:$0xff] %v224
                %v226 = vld [vmem:[%s176 + $0x168] sm:$0xff]
                %227 = vst [vmem:[%s177 + $0xc0] sm:$0xff] %v226
                %v228 = vld [vmem:[%s176 + $0x170] sm:$0xff]
                %229 = vst [vmem:[%s177 + $0xc8] sm:$0xff] %v228
                %v230 = vld [vmem:[%s176 + $0x178] sm:$0xff]
                %231 = vst [vmem:[%s177 + $0xd0] sm:$0xff] %v230
                %v232 = vld [vmem:[%s176 + $0x180] sm:$0xff]
                %233 = vst [vmem:[%s177 + $0xd8] sm:$0xff] %v232
              $region41: #{lenet5_forward.3} parent=35 // loop_footer
                %s175 = sadd.s32 1, %s171
              $region42: #{lenet5_forward.3} parent=35 // loop_footer_branch
                %170 = sbr.rel target = $region38
              $region43: #{lenet5_forward.3} parent=35 // loop_exit
                _
            $region36: #{lenet5_forward.3} parent=31 // pred_fallthru
              _
            // Predicated region
            $region44: #{lenet5_forward.3} parent=31 // pred_check
              _
            $region45: #{lenet5_forward.3} parent=31 // pred_check_branch
              %235 = sbr.rel target = $region47
            $region46: #{lenet5_forward.3} parent=31 // pred_region
              _
            $region47: #{lenet5_forward.3} parent=31 // pred_fallthru
              _
          $region32: #{lenet5_forward.3} parent=27 // pred_fallthru
            _
          %236 = vnop
        $region28: #{lenet5_forward.3} parent=23 // pred_fallthru
          _
      $region24: #{lenet5_forward.3} parent=5 // pred_fallthru
        _
      %p237 = scmp.le.s32.totalorder 1, %s11
      %p238 = scmp.lt.s32.totalorder %s11, 3
      %p239 = pnand %p237, %p238
      %p240 = pneg %p239
      // Predicated region
      $region48: #{lenet5_forward.3} parent=5 // pred_check
        _
      $region49: #{lenet5_forward.3} parent=5 // pred_check_branch
        %242 = sbr.rel (%p239) target = $region51
      $region50: #{lenet5_forward.3} parent=5 // pred_region
        %s243 = ssub.s32 %s11, 1
        %s244 = sand.u32 %s66, 1
        %s245 = sand.u32 %s66, 1
        %s246 = smul.addr %s245, 224
        %s247 = scalar_lea.vmem [#allocation2], %s246
        // Predicated region
        $region52: #{lenet5_forward.3} parent=50 // pred_check
          %p248 = pneg %p79
        $region53: #{lenet5_forward.3} parent=50 // pred_check_branch
          %250 = sbr.rel (%p248) target = $region55
        $region54: #{lenet5_forward.3} parent=50 // pred_region
          _
        $region55: #{lenet5_forward.3} parent=50 // pred_fallthru
          _
        %p251 = pneg %p32
        %p252 = pneg %p29
        %p253 = pneg %p53
        %p254 = pneg %p50
        %s255 = sand.u32 %s66, 1
        %s256 = sand.u32 %s66, 1
        %s257 = smul.addr %s256, 224
        %s258 = scalar_lea.vmem [#allocation2], %s257
        %p259 = pneg %p79
        %p260 = pneg %p76
        %p261 = pneg %p105
        %p262 = pneg %p102
        %s263 = smul.u32 7, %s16
        %p264 = scmp.lt.s32.totalorder %s263, 13
        %s265 = scalar_select %p264, %s263, 13
        %s266 = smul.addr %s265, 8
        %s267 = scalar_lea.vmem %s3, %s266
        %p268 = pneg %p131
        %p269 = pneg %p128
        %s270 = smul.u32 7, %s16
        %p271 = scmp.lt.s32.totalorder %s270, 13
        %s272 = scalar_select %p271, %s270, 13
        %s273 = smul.addr %s272, 8
        %s274 = scalar_lea.vmem %s4, %s273
        %s275 = smul.u32 7, %s16
        %s276 = smul.u32 7, %s16
        %p277 = scmp.lt.s32.totalorder %s276, 13
        %s278 = scalar_select %p277, %s276, 13
        %s279 = smul.addr %s278, 8
        %s280 = scalar_lea.vmem %s3, %s279
        %s281 = smul.u32 7, %s16
        %s282 = smul.u32 7, %s16
        %p283 = scmp.lt.s32.totalorder %s282, 13
        %s284 = scalar_select %p283, %s282, 13
        %s285 = smul.addr %s284, 8
        %s286 = scalar_lea.vmem %s4, %s285
        %s287 = smul.u32 7, %s16
        %v288 = vld [vmem:[%s0] sm:$0xff]
        %v289 = vld [vmem:[%s247] sm:$0xff]
        %v290 = vld [vmem:[%s247 + $0x8] sm:$0xff]
        %v291 = vld [vmem:[%s247 + $0x10] sm:$0xff]
        %v292 = vld [vmem:[%s247 + $0x18] sm:$0xff]
        %v293 = vld [vmem:[%s247 + $0x20] sm:$0xff]
        %v294 = vld [vmem:[%s247 + $0x28] sm:$0xff]
        %v295 = vld [vmem:[%s247 + $0x30] sm:$0xff]
        %v296 = vld [vmem:[%s247 + $0x38] sm:$0xff]
        %v297 = vld [vmem:[%s247 + $0x40] sm:$0xff]
        %v298 = vld [vmem:[%s247 + $0x48] sm:$0xff]
        %v299 = vld [vmem:[%s247 + $0x50] sm:$0xff]
        %v300 = vld [vmem:[%s247 + $0x58] sm:$0xff]
        %v301 = vld [vmem:[%s247 + $0x60] sm:$0xff]
        %v302 = vld [vmem:[%s247 + $0x68] sm:$0xff]
        %v303 = vld [vmem:[%s247 + $0x70] sm:$0xff]
        %v304 = vld [vmem:[%s247 + $0x78] sm:$0xff]
        %v305 = vld [vmem:[%s247 + $0x80] sm:$0xff]
        %v306 = vld [vmem:[%s247 + $0x88] sm:$0xff]
        %v307 = vld [vmem:[%s247 + $0x90] sm:$0xff]
        %v308 = vld [vmem:[%s247 + $0x98] sm:$0xff]
        %v309 = vld [vmem:[%s247 + $0xa0] sm:$0xff]
        %v310 = vld [vmem:[%s247 + $0xa8] sm:$0xff]
        %v311 = vld [vmem:[%s247 + $0xb0] sm:$0xff]
        %v312 = vld [vmem:[%s247 + $0xb8] sm:$0xff]
        %v313 = vld [vmem:[%s247 + $0xc0] sm:$0xff]
        %v314 = vld [vmem:[%s247 + $0xc8] sm:$0xff]
        %v315 = vld [vmem:[%s247 + $0xd0] sm:$0xff]
        %v316 = vld [vmem:[%s247 + $0xd8] sm:$0xff]
        %v317 = vld [vmem:[%s1] sm:$0xff]
        %319 = vset.pattern.permute.xlu0 0
        %320 = vperm.xlu0 %319, %v317
        %v321 = vpop.permute.xlu0 %320
        %vm323 = vcmask 261120
        %v325 = vsel %vm323, %v288, 0
        %327 = vmatprep.subr.mxu0 0.0
        %328 = vmatpush1.msra.mxu0 0.0
        %329 = vmatprep.subr.mxu0 0.0
        %330 = vmatpush1.msra.mxu0 0.0
        %331 = vmatprep.subr.mxu0 0.0
        %332 = vmatpush1.msra.mxu0 0.0
        %333 = vmatprep.subr.mxu0 0.0
        %334 = vmatpush1.msra.mxu0 0.0
        %335 = vmatprep.subr.mxu0 0.0
        %336 = vmatpush1.msra.mxu0 0.0
        %337 = vmatprep.subr.mxu0 0.0
        %338 = vmatpush1.msra.mxu0 0.0
        %339 = vmatprep.subr.mxu0 0.0
        %340 = vmatpush1.msra.mxu0 0.0
        %341 = vmatprep.subr.mxu0 0.0
        %342 = vmatpush1.msra.mxu0 0.0
        %343 = vmatprep.subr.mxu0 0.0
        %344 = vmatpush1.msra.mxu0 0.0
        %345 = vmatprep.subr.mxu0 0.0
        %346 = vmatpush1.msra.mxu0 0.0
        %347 = vmatprep.subr.mxu0 0.0
        %348 = vmatpush1.msra.mxu0 0.0
        %349 = vmatprep.subr.mxu0 0.0
        %350 = vmatpush1.msra.mxu0 0.0
        %351 = vmatprep.subr.mxu0 %v311
        %352 = vmatpush1.msra.mxu0 %v310
        %353 = vmatprep.subr.mxu0 %v304
        %354 = vmatpush1.msra.mxu0 %v303
        %355 = vmatprep.subr.mxu0 %v297
        %356 = vmatpush1.msra.mxu0 %v296
        %357 = vmatprep.subr.mxu0 %v290
        %358 = vmatpush1.msra.mxu0 %v289
        %359 = vmatprep.subr.mxu0 0.0
        %360 = vmatpush2.msra.mxu0 0.0
        %361 = vmatprep.subr.mxu0 0.0
        %362 = vmatpush2.msra.mxu0 0.0
        %363 = vmatprep.subr.mxu0 0.0
        %364 = vmatpush2.msra.mxu0 0.0
        %365 = vmatprep.subr.mxu0 0.0
        %366 = vmatpush2.msra.mxu0 0.0
        %367 = vmatprep.subr.mxu0 0.0
        %368 = vmatpush2.msra.mxu0 0.0
        %369 = vmatprep.subr.mxu0 0.0
        %370 = vmatpush2.msra.mxu0 0.0
        %371 = vmatprep.subr.mxu0 0.0
        %372 = vmatpush2.msra.mxu0 0.0
        %373 = vmatprep.subr.mxu0 0.0
        %374 = vmatpush2.msra.mxu0 0.0
        %375 = vmatprep.subr.mxu0 0.0
        %376 = vmatpush2.msra.mxu0 0.0
        %377 = vmatprep.subr.mxu0 0.0
        %378 = vmatpush2.msra.mxu0 0.0
        %379 = vmatprep.subr.mxu0 0.0
        %380 = vmatpush2.msra.mxu0 0.0
        %381 = vmatprep.subr.mxu0 0.0
        %382 = vmatpush2.msra.mxu0 0.0
        %383 = vmatprep.subr.mxu0 0.0
        %384 = vmatpush2.msra.mxu0 0.0
        %385 = vmatprep.subr.mxu0 0.0
        %386 = vmatpush2.msra.mxu0 0.0
        %387 = vmatprep.subr.mxu0 0.0
        %388 = vmatpush2.msra.mxu0 0.0
        %389 = vmatprep.subr.mxu0 0.0
        %390 = vmatpush2.msra.mxu0 0.0
        %391 = vmatprep.mubr.f32.mxu0 0.0
        %392 = vmatmul.mubr.f32.gmra.mxu0 %v325
        %v393 = vpop.f32.mrf.mxu0
        %v394 = vadd.f32 %v321, %v393
        %v395 = vpop.f32.mrf.mxu0
        %v396 = vadd.f32 %v321, %v395
        %397 = vdwg.mxu0
        %398 = vmatprep.subr.mxu0 0.0
        %399 = vmatpush1.msra.mxu0 0.0
        %400 = vmatprep.subr.mxu0 0.0
        %401 = vmatpush1.msra.mxu0 0.0
        %402 = vmatprep.subr.mxu0 0.0
        %403 = vmatpush1.msra.mxu0 0.0
        %404 = vmatprep.subr.mxu0 0.0
        %405 = vmatpush1.msra.mxu0 0.0
        %406 = vmatprep.subr.mxu0 0.0
        %407 = vmatpush1.msra.mxu0 0.0
        %408 = vmatprep.subr.mxu0 0.0
        %409 = vmatpush1.msra.mxu0 0.0
        %410 = vmatprep.subr.mxu0 0.0
        %411 = vmatpush1.msra.mxu0 0.0
        %412 = vmatprep.subr.mxu0 0.0
        %413 = vmatpush1.msra.mxu0 0.0
        %414 = vmatprep.subr.mxu0 0.0
        %415 = vmatpush1.msra.mxu0 0.0
        %416 = vmatprep.subr.mxu0 0.0
        %417 = vmatpush1.msra.mxu0 0.0
        %418 = vmatprep.subr.mxu0 0.0
        %419 = vmatpush1.msra.mxu0 0.0
        %420 = vmatprep.subr.mxu0 0.0
        %421 = vmatpush1.msra.mxu0 0.0
        %422 = vmatprep.subr.mxu0 %v313
        %423 = vmatpush1.msra.mxu0 %v312
        %424 = vmatprep.subr.mxu0 %v306
        %425 = vmatpush1.msra.mxu0 %v305
        %426 = vmatprep.subr.mxu0 %v299
        %427 = vmatpush1.msra.mxu0 %v298
        %428 = vmatprep.subr.mxu0 %v292
        %429 = vmatpush1.msra.mxu0 %v291
        %430 = vmatprep.subr.mxu0 0.0
        %431 = vmatpush2.msra.mxu0 0.0
        %432 = vmatprep.subr.mxu0 0.0
        %433 = vmatpush2.msra.mxu0 0.0
        %434 = vmatprep.subr.mxu0 0.0
        %435 = vmatpush2.msra.mxu0 0.0
        %436 = vmatprep.subr.mxu0 0.0
        %437 = vmatpush2.msra.mxu0 0.0
        %438 = vmatprep.subr.mxu0 0.0
        %439 = vmatpush2.msra.mxu0 0.0
        %440 = vmatprep.subr.mxu0 0.0
        %441 = vmatpush2.msra.mxu0 0.0
        %442 = vmatprep.subr.mxu0 0.0
        %443 = vmatpush2.msra.mxu0 0.0
        %444 = vmatprep.subr.mxu0 0.0
        %445 = vmatpush2.msra.mxu0 0.0
        %446 = vmatprep.subr.mxu0 0.0
        %447 = vmatpush2.msra.mxu0 0.0
        %448 = vmatprep.subr.mxu0 0.0
        %449 = vmatpush2.msra.mxu0 0.0
        %450 = vmatprep.subr.mxu0 0.0
        %451 = vmatpush2.msra.mxu0 0.0
        %452 = vmatprep.subr.mxu0 0.0
        %453 = vmatpush2.msra.mxu0 0.0
        %454 = vmatprep.subr.mxu0 0.0
        %455 = vmatpush2.msra.mxu0 0.0
        %456 = vmatprep.subr.mxu0 0.0
        %457 = vmatpush2.msra.mxu0 0.0
        %458 = vmatprep.subr.mxu0 0.0
        %459 = vmatpush2.msra.mxu0 0.0
        %460 = vmatprep.subr.mxu0 0.0
        %461 = vmatpush2.msra.mxu0 0.0
        %462 = vmatprep.mubr.f32.mxu0 0.0
        %463 = vmatmul.mubr.f32.gmra.mxu0 %v325
        %v464 = vpop.f32.mrf.mxu0
        %v465 = vadd.f32 %v321, %v464
        %v466 = vpop.f32.mrf.mxu0
        %v467 = vadd.f32 %v321, %v466
        %468 = vdwg.mxu0
        %469 = vmatprep.subr.mxu0 0.0
        %470 = vmatpush1.msra.mxu0 0.0
        %471 = vmatprep.subr.mxu0 0.0
        %472 = vmatpush1.msra.mxu0 0.0
        %473 = vmatprep.subr.mxu0 0.0
        %474 = vmatpush1.msra.mxu0 0.0
        %475 = vmatprep.subr.mxu0 0.0
        %476 = vmatpush1.msra.mxu0 0.0
        %477 = vmatprep.subr.mxu0 0.0
        %478 = vmatpush1.msra.mxu0 0.0
        %479 = vmatprep.subr.mxu0 0.0
        %480 = vmatpush1.msra.mxu0 0.0
        %481 = vmatprep.subr.mxu0 0.0
        %482 = vmatpush1.msra.mxu0 0.0
        %483 = vmatprep.subr.mxu0 0.0
        %484 = vmatpush1.msra.mxu0 0.0
        %485 = vmatprep.subr.mxu0 0.0
        %486 = vmatpush1.msra.mxu0 0.0
        %487 = vmatprep.subr.mxu0 0.0
        %488 = vmatpush1.msra.mxu0 0.0
        %489 = vmatprep.subr.mxu0 0.0
        %490 = vmatpush1.msra.mxu0 0.0
        %491 = vmatprep.subr.mxu0 0.0
        %492 = vmatpush1.msra.mxu0 0.0
        %493 = vmatprep.subr.mxu0 %v315
        %494 = vmatpush1.msra.mxu0 %v314
        %495 = vmatprep.subr.mxu0 %v308
        %496 = vmatpush1.msra.mxu0 %v307
        %497 = vmatprep.subr.mxu0 %v301
        %498 = vmatpush1.msra.mxu0 %v300
        %499 = vmatprep.subr.mxu0 %v294
        %500 = vmatpush1.msra.mxu0 %v293
        %501 = vmatprep.subr.mxu0 0.0
        %502 = vmatpush2.msra.mxu0 0.0
        %503 = vmatprep.subr.mxu0 0.0
        %504 = vmatpush2.msra.mxu0 0.0
        %505 = vmatprep.subr.mxu0 0.0
        %506 = vmatpush2.msra.mxu0 0.0
        %507 = vmatprep.subr.mxu0 0.0
        %508 = vmatpush2.msra.mxu0 0.0
        %509 = vmatprep.subr.mxu0 0.0
        %510 = vmatpush2.msra.mxu0 0.0
        %511 = vmatprep.subr.mxu0 0.0
        %512 = vmatpush2.msra.mxu0 0.0
        %513 = vmatprep.subr.mxu0 0.0
        %514 = vmatpush2.msra.mxu0 0.0
        %515 = vmatprep.subr.mxu0 0.0
        %516 = vmatpush2.msra.mxu0 0.0
        %517 = vmatprep.subr.mxu0 0.0
        %518 = vmatpush2.msra.mxu0 0.0
        %519 = vmatprep.subr.mxu0 0.0
        %520 = vmatpush2.msra.mxu0 0.0
        %521 = vmatprep.subr.mxu0 0.0
        %522 = vmatpush2.msra.mxu0 0.0
        %523 = vmatprep.subr.mxu0 0.0
        %524 = vmatpush2.msra.mxu0 0.0
        %525 = vmatprep.subr.mxu0 0.0
        %526 = vmatpush2.msra.mxu0 0.0
        %527 = vmatprep.subr.mxu0 0.0
        %528 = vmatpush2.msra.mxu0 0.0
        %529 = vmatprep.subr.mxu0 0.0
        %530 = vmatpush2.msra.mxu0 0.0
        %531 = vmatprep.subr.mxu0 0.0
        %532 = vmatpush2.msra.mxu0 0.0
        %533 = vmatprep.mubr.f32.mxu0 0.0
        %534 = vmatmul.mubr.f32.gmra.mxu0 %v325
        %v535 = vpop.f32.mrf.mxu0
        %v536 = vadd.f32 %v321, %v535
        %v537 = vpop.f32.mrf.mxu0
        %v538 = vadd.f32 %v321, %v537
        %539 = vdwg.mxu0
        %540 = vmatprep.subr.mxu0 0.0
        %541 = vmatpush1.msra.mxu0 0.0
        %542 = vmatprep.subr.mxu0 0.0
        %543 = vmatpush1.msra.mxu0 0.0
        %544 = vmatprep.subr.mxu0 0.0
        %545 = vmatpush1.msra.mxu0 0.0
        %546 = vmatprep.subr.mxu0 0.0
        %547 = vmatpush1.msra.mxu0 0.0
        %548 = vmatprep.subr.mxu0 0.0
        %549 = vmatpush1.msra.mxu0 0.0
        %550 = vmatprep.subr.mxu0 0.0
        %551 = vmatpush1.msra.mxu0 0.0
        %552 = vmatprep.subr.mxu0 0.0
        %553 = vmatpush1.msra.mxu0 0.0
        %554 = vmatprep.subr.mxu0 0.0
        %555 = vmatpush1.msra.mxu0 0.0
        %556 = vmatprep.subr.mxu0 0.0
        %557 = vmatpush1.msra.mxu0 0.0
        %558 = vmatprep.subr.mxu0 0.0
        %559 = vmatpush1.msra.mxu0 0.0
        %560 = vmatprep.subr.mxu0 0.0
        %561 = vmatpush1.msra.mxu0 0.0
        %562 = vmatprep.subr.mxu0 0.0
        %563 = vmatpush1.msra.mxu0 0.0
        %564 = vmatprep.subr.mxu0 0.0
        %565 = vmatpush1.msra.mxu0 %v316
        %566 = vmatprep.subr.mxu0 0.0
        %567 = vmatpush1.msra.mxu0 %v309
        %568 = vmatprep.subr.mxu0 0.0
        %569 = vmatpush1.msra.mxu0 %v302
        %570 = vmatprep.subr.mxu0 0.0
        %571 = vmatpush1.msra.mxu0 %v295
        %572 = vmatprep.subr.mxu0 0.0
        %573 = vmatpush2.msra.mxu0 0.0
        %574 = vmatprep.subr.mxu0 0.0
        %575 = vmatpush2.msra.mxu0 0.0
        %576 = vmatprep.subr.mxu0 0.0
        %577 = vmatpush2.msra.mxu0 0.0
        %578 = vmatprep.subr.mxu0 0.0
        %579 = vmatpush2.msra.mxu0 0.0
        %580 = vmatprep.subr.mxu0 0.0
        %581 = vmatpush2.msra.mxu0 0.0
        %582 = vmatprep.subr.mxu0 0.0
        %583 = vmatpush2.msra.mxu0 0.0
        %584 = vmatprep.subr.mxu0 0.0
        %585 = vmatpush2.msra.mxu0 0.0
        %586 = vmatprep.subr.mxu0 0.0
        %587 = vmatpush2.msra.mxu0 0.0
        %588 = vmatprep.subr.mxu0 0.0
        %589 = vmatpush2.msra.mxu0 0.0
        %590 = vmatprep.subr.mxu0 0.0
        %591 = vmatpush2.msra.mxu0 0.0
        %592 = vmatprep.subr.mxu0 0.0
        %593 = vmatpush2.msra.mxu0 0.0
        %594 = vmatprep.subr.mxu0 0.0
        %595 = vmatpush2.msra.mxu0 0.0
        %596 = vmatprep.subr.mxu0 0.0
        %597 = vmatpush2.msra.mxu0 0.0
        %598 = vmatprep.subr.mxu0 0.0
        %599 = vmatpush2.msra.mxu0 0.0
        %600 = vmatprep.subr.mxu0 0.0
        %601 = vmatpush2.msra.mxu0 0.0
        %602 = vmatprep.subr.mxu0 0.0
        %603 = vmatpush2.msra.mxu0 0.0
        %604 = vmatprep.mubr.f32.mxu0 0.0
        %605 = vmatmul.mubr.f32.gmra.mxu0 %v325
        %v606 = vpop.f32.mrf.mxu0
        %v607 = vadd.f32 %v321, %v606
        %v608 = vpop.f32.mrf.mxu0
        %609 = vdwg.mxu0
        %610 = vst [vmem:[%s280] sm:$0xff] %v394
        %611 = vst [vmem:[%s280 + $0x8] sm:$0xff] %v396
        %612 = vst [vmem:[%s280 + $0x10] sm:$0xff] %v465
        %613 = vst [vmem:[%s280 + $0x18] sm:$0xff] %v467
        %614 = vst [vmem:[%s280 + $0x20] sm:$0xff] %v536
        %615 = vst [vmem:[%s280 + $0x28] sm:$0xff] %v538
        %616 = vst [vmem:[%s280 + $0x30] sm:$0xff] %v607
        %v617 = vtanh.pop %v394
        %v618 = vtanh.pop %v396
        %v619 = vtanh.pop %v465
        %v620 = vtanh.pop %v467
        %v621 = vtanh.pop %v536
        %v622 = vtanh.pop %v538
        %v623 = vtanh.pop %v607
        %624 = vst [vmem:[%s286] sm:$0xff] %v617
        %625 = vst [vmem:[%s286 + $0x8] sm:$0xff] %v618
        %626 = vst [vmem:[%s286 + $0x10] sm:$0xff] %v619
        %627 = vst [vmem:[%s286 + $0x18] sm:$0xff] %v620
        %628 = vst [vmem:[%s286 + $0x20] sm:$0xff] %v621
        %629 = vst [vmem:[%s286 + $0x28] sm:$0xff] %v622
        %630 = vst [vmem:[%s286 + $0x30] sm:$0xff] %v623
        %s631 = smul.u32 7, %s16
        %p632 = scmp.lt.s32.totalorder %s631, 13
        %s633 = scalar_select %p632, %s631, 13
        %s634 = smul.addr %s633, 8
        %s635 = scalar_lea.vmem %s3, %s634
        %s636 = smul.u32 7, %s16
        %p637 = scmp.lt.s32.totalorder %s636, 13
        %s638 = scalar_select %p637, %s636, 13
        %s639 = smul.addr %s638, 8
        %s640 = scalar_lea.vmem %s4, %s639
        // Predicated region
        $region56: #{lenet5_forward.3} parent=50 // pred_check
          %p641 = pneg %p102
        $region57: #{lenet5_forward.3} parent=50 // pred_check_branch
          %643 = sbr.rel (%p641) target = $region59
        $region58: #{lenet5_forward.3} parent=50 // pred_region
          %s644 = smul.u32 7, %s16
        $region59: #{lenet5_forward.3} parent=50 // pred_fallthru
          _
        // Predicated region
        $region60: #{lenet5_forward.3} parent=50 // pred_check
          %p645 = pneg %p128
        $region61: #{lenet5_forward.3} parent=50 // pred_check_branch
          %647 = sbr.rel (%p645) target = $region63
        $region62: #{lenet5_forward.3} parent=50 // pred_region
          %s648 = smul.u32 7, %s16
        $region63: #{lenet5_forward.3} parent=50 // pred_fallthru
          _
      $region51: #{lenet5_forward.3} parent=5 // pred_fallthru
        _
      %p649 = scmp.le.s32.totalorder 2, %s11
      // Predicated region
      $region64: #{lenet5_forward.3} parent=5 // pred_check
        %p650 = pneg %p649
      $region65: #{lenet5_forward.3} parent=5 // pred_check_branch
        %652 = sbr.rel (%p650) target = $region67
      $region66: #{lenet5_forward.3} parent=5 // pred_region
        %s653 = ssub.s32 %s11, 2
        // Predicated region
        $region68: #{lenet5_forward.3} parent=66 // pred_check
          %p654 = pneg %p108
        $region69: #{lenet5_forward.3} parent=66 // pred_check_branch
          %656 = sbr.rel (%p654) target = $region71
        $region70: #{lenet5_forward.3} parent=66 // pred_region
          %s657 = smul.u32 7, %s17
          %p658 = scmp.lt.s32.totalorder %s657, 13
          %s659 = scalar_select %p658, %s657, 13
          %s660 = smul.addr %s659, 8
          %s661 = scalar_lea.vmem %s3, %s660
        $region71: #{lenet5_forward.3} parent=66 // pred_fallthru
          _
        // Predicated region
        $region72: #{lenet5_forward.3} parent=66 // pred_check
          %p662 = pneg %p134
        $region73: #{lenet5_forward.3} parent=66 // pred_check_branch
          %664 = sbr.rel (%p662) target = $region75
        $region74: #{lenet5_forward.3} parent=66 // pred_region
          %s665 = smul.u32 7, %s17
          %p666 = scmp.lt.s32.totalorder %s665, 13
          %s667 = scalar_select %p666, %s665, 13
          %s668 = smul.addr %s667, 8
          %s669 = scalar_lea.vmem %s4, %s668
        $region75: #{lenet5_forward.3} parent=66 // pred_fallthru
          _
      $region67: #{lenet5_forward.3} parent=5 // pred_fallthru
        _
    $region6: #{lenet5_forward.3} parent=1 // loop_footer
      %s15 = sadd.s32 1, %s11
    $region7: #{lenet5_forward.3} parent=1 // loop_footer_branch
      %10 = sbr.rel target = $region3
    $region8: #{lenet5_forward.3} parent=1 // loop_exit
      _

// kernel: lenet5_forward.4
$region0: #{lenet5_forward.4}
  #allocation0 [shape = 'u32[]', space=smem, size = 0x4, offset = 0x4, fixed_abs, tag = 'smem constant byte address 0x4 - core index']
  #allocation1 [shape = 'u32[144,128]{1,0:T(1,128)}', space=vmem, size = 0x12000, scoped, tag = 'internal scratch']
  %s0 = inlined_call_operand.vmem [shape: f32[16,152], index: 0, kind: input, shape index: {}]
  %s1 = inlined_call_operand.vmem [shape: f32[16,1], index: 1, kind: input, shape index: {}]
  %s2 = inlined_call_operand.vmem [shape: f32[152,256], index: 2, kind: input, shape index: {}]
  %s3 = inlined_call_operand.vmem [shape: f32[16,256], index: 3, kind: output, shape index: {}]
  %s4 = sld [smem:[#allocation0]]
  $region117: #{lenet5_forward.4} parent=0
    _
  %s6 = ssub.s32 1, %s4
  %s7 = scalar_select 0, %s6, %s4
  $region1: #{lenet5_forward.4} parent=0
    #allocation2 [shape = 'u8[155648]{0}', space=vmem, size = 0x26000, scoped, tag = 'input window, operand 2']
    #allocation3 [shape = 'u8[16384]{0}', space=vmem, size = 0x4000, scoped, tag = 'output window, operand 0']
    loop: start=0, step=1, limit=4
    $region2: #{lenet5_forward.4} parent=1 // loop_pre_header
      _
    $region3: #{lenet5_forward.4} parent=1 // loop_header
      %s9 = sphi 0, %s13
      %p10 = scmp.ge.s32.totalorder %s9, 4
      %s17 = sphi 0, %s17
      %s19 = sphi 0, %s17
      %s20 = sphi 0, %s19
      %s34 = sphi 0, %s20
      %s38 = sphi 0, %s38
      %s40 = sphi 0, %s38
      %s41 = sphi 0, %s40
      %s55 = sphi 0, %s41
      %s61 = sphi 0, %s63
      %s64 = sphi 0, %s61
      %s65 = sphi 0, %s64
      %s81 = sphi 0, %s65
      %s87 = sphi 0, %s89
      %s90 = sphi 0, %s87
      %s91 = sphi 0, %s90
      %s107 = sphi 0, %s91
    $region4: #{lenet5_forward.4} parent=1 // loop_header_branch
      %12 = sbr.rel (%p10) target = $region8
    $region5: #{lenet5_forward.4} parent=1 // loop_body
      %s14 = ssub.s32 %s9, 1
      %s15 = ssub.s32 %s9, 2
      %s16 = sadd.s32 %s9, 1
      %s18 = sadd.s32 %s17, 1
      %p21 = scmp.eq.s32.totalorder %s9, 1
      %p22 = scmp.ne.s32.totalorder %s17, %s19
      %p23 = scmp.eq.s32.totalorder %s9, 0
      %p24 = por %p22, %p23
      %p25 = scmp.ne.s32.totalorder %s17, %s19
      %p26 = scmp.eq.s32.totalorder %s14, 1
      %p27 = por %p25, %p26
      %p28 = scmp.ne.s32.totalorder %s19, %s20
      %p29 = scmp.eq.s32.totalorder %s14, 0
      %p30 = por %p28, %p29
      %p31 = scmp.ne.s32.totalorder %s19, %s20
      %p32 = scmp.eq.s32.totalorder %s15, 1
      %p33 = por %p31, %p32
      %p35 = scmp.ne.s32.totalorder %s20, %s34
      %p36 = scmp.eq.s32.totalorder %s15, 0
      %p37 = por %p35, %p36
      %s39 = sadd.s32 %s38, 1
      %p42 = scmp.eq.s32.totalorder %s9, 1
      %p43 = scmp.ne.s32.totalorder %s38, %s40
      %p44 = scmp.eq.s32.totalorder %s9, 0
      %p45 = por %p43, %p44
      %p46 = scmp.ne.s32.totalorder %s38, %s40
      %p47 = scmp.eq.s32.totalorder %s14, 1
      %p48 = por %p46, %p47
      %p49 = scmp.ne.s32.totalorder %s40, %s41
      %p50 = scmp.eq.s32.totalorder %s14, 0
      %p51 = por %p49, %p50
      %p52 = scmp.ne.s32.totalorder %s40, %s41
      %p53 = scmp.eq.s32.totalorder %s15, 1
      %p54 = por %p52, %p53
      %p56 = scmp.ne.s32.totalorder %s41, %s55
      %p57 = scmp.eq.s32.totalorder %s15, 0
      %p58 = por %p56, %p57
      %s59 = ssub.s32 %s9, %s16
      %p60 = scmp.eq.s32.totalorder %s59, 0
      %s62 = sadd.s32 %s61, 1
      %s63 = scalar_select %p60, %s61, %s62
      %p66 = pneg %p60
      %p67 = scmp.eq.s32.totalorder %s9, 1
      %p68 = por %p66, %p67
      %p69 = scmp.ne.s32.totalorder %s61, %s64
      %p70 = scmp.eq.s32.totalorder %s9, 0
      %p71 = por %p69, %p70
      %p72 = scmp.ne.s32.totalorder %s61, %s64
      %p73 = scmp.eq.s32.totalorder %s14, 1
      %p74 = por %p72, %p73
      %p75 = scmp.ne.s32.totalorder %s64, %s65
      %p76 = scmp.eq.s32.totalorder %s14, 0
      %p77 = por %p75, %p76
      %p78 = scmp.ne.s32.totalorder %s64, %s65
      %p79 = scmp.eq.s32.totalorder %s15, 1
      %p80 = por %p78, %p79
      %p82 = scmp.ne.s32.totalorder %s65, %s81
      %p83 = scmp.eq.s32.totalorder %s15, 0
      %p84 = por %p82, %p83
      %s85 = ssub.s32 %s9, %s16
      %p86 = scmp.eq.s32.totalorder %s85, 0
      %s88 = sadd.s32 %s87, 1
      %s89 = scalar_select %p86, %s87, %s88
      %p92 = pneg %p86
      %p93 = scmp.eq.s32.totalorder %s9, 1
      %p94 = por %p92, %p93
      %p95 = scmp.ne.s32.totalorder %s87, %s90
      %p96 = scmp.eq.s32.totalorder %s9, 0
      %p97 = por %p95, %p96
      %p98 = scmp.ne.s32.totalorder %s87, %s90
      %p99 = scmp.eq.s32.totalorder %s14, 1
      %p100 = por %p98, %p99
      %p101 = scmp.ne.s32.totalorder %s90, %s91
      %p102 = scmp.eq.s32.totalorder %s14, 0
      %p103 = por %p101, %p102
      %p104 = scmp.ne.s32.totalorder %s90, %s91
      %p105 = scmp.eq.s32.totalorder %s15, 1
      %p106 = por %p104, %p105
      %p108 = scmp.ne.s32.totalorder %s91, %s107
      %p109 = scmp.eq.s32.totalorder %s15, 0
      %p110 = por %p108, %p109
      %p111 = scmp.le.s32.totalorder 1, %s9
      %p112 = scmp.lt.s32.totalorder %s9, 3
      %p113 = pnand %p111, %p112
      %p114 = pneg %p113
      // Predicated region
      $region9: #{lenet5_forward.4} parent=5 // pred_check
        _
      $region10: #{lenet5_forward.4} parent=5 // pred_check_branch
        %116 = sbr.rel (%p113) target = $region12
      $region11: #{lenet5_forward.4} parent=5 // pred_region
        %s117 = ssub.s32 %s9, 1
        // Predicated region
        $region13: #{lenet5_forward.4} parent=11 // pred_check
          %p118 = pneg %p30
        $region14: #{lenet5_forward.4} parent=11 // pred_check_branch
          %120 = sbr.rel (%p118) target = $region16
        $region15: #{lenet5_forward.4} parent=11 // pred_region
          _
        $region16: #{lenet5_forward.4} parent=11 // pred_fallthru
          _
        // Predicated region
        $region17: #{lenet5_forward.4} parent=11 // pred_check
          %p121 = pneg %p51
        $region18: #{lenet5_forward.4} parent=11 // pred_check_branch
          %123 = sbr.rel (%p121) target = $region20
        $region19: #{lenet5_forward.4} parent=11 // pred_region
          _
        $region20: #{lenet5_forward.4} parent=11 // pred_fallthru
          _
      $region12: #{lenet5_forward.4} parent=5 // pred_fallthru
        _
      %p124 = scmp.lt.s32.totalorder %s9, 2
      // Predicated region
      $region21: #{lenet5_forward.4} parent=5 // pred_check
        %p125 = pneg %p124
      $region22: #{lenet5_forward.4} parent=5 // pred_check_branch
        %127 = sbr.rel (%p125) target = $region24
      $region23: #{lenet5_forward.4} parent=5 // pred_region
        // Predicated region
        $region25: #{lenet5_forward.4} parent=23 // pred_check
          %p128 = pneg %p71
        $region26: #{lenet5_forward.4} parent=23 // pred_check_branch
          %130 = sbr.rel (%p128) target = $region28
        $region27: #{lenet5_forward.4} parent=23 // pred_region
          %s131 = sand.u32 %s61, 1
          %s132 = sand.u32 %s61, 1
          %s133 = smul.addr %s132, 152
          %s134 = scalar_lea.vmem [#allocation2], %s133
          %s135 = smul.addr %s9, 8
          %s136 = scalar_lea.vmem %s2, %s135
          // Predicated region
          $region29: #{lenet5_forward.4} parent=27 // pred_check
            _
          $region30: #{lenet5_forward.4} parent=27 // pred_check_branch
            %138 = sbr.rel (0) target = $region32
          $region31: #{lenet5_forward.4} parent=27 // pred_region
            // Predicated region
            $region33: #{lenet5_forward.4} parent=31 // pred_check
              _
            $region34: #{lenet5_forward.4} parent=31 // pred_check_branch
              %140 = sbr.rel (0) target = $region36
            $region35: #{lenet5_forward.4} parent=31 // pred_region
              // Predicated region
              $region48: #{lenet5_forward.4} parent=35 // pred_check
                _
              $region49: #{lenet5_forward.4} parent=35 // pred_check_branch
                %192 = sbr.rel (0) target = $region51
              $region50: #{lenet5_forward.4} parent=35 // pred_region
                loop: start=0, step=1, limit=1
                $region52: #{lenet5_forward.4} parent=50 // loop_pre_header
                  _
                $region53: #{lenet5_forward.4} parent=50 // loop_header
                  %s194 = sphi 0, %s198
                  %p195 = scmp.ge.s32.totalorder %s194, 1
                  %s199 = sphi %s136, %s136
                  %s200 = sphi %s134, %s134
                $region54: #{lenet5_forward.4} parent=50 // loop_header_branch
                  %197 = sbr.rel (%p195) target = $region58
                $region55: #{lenet5_forward.4} parent=50 // loop_body
                  %v201 = vld [vmem:[%s199] sm:$0xff]
                  %202 = vst [vmem:[%s200] sm:$0xff] %v201
                  %v203 = vld [vmem:[%s199 + $0x10] sm:$0xff]
                  %204 = vst [vmem:[%s200 + $0x8] sm:$0xff] %v203
                  %v205 = vld [vmem:[%s199 + $0x20] sm:$0xff]
                  %206 = vst [vmem:[%s200 + $0x10] sm:$0xff] %v205
                  %v207 = vld [vmem:[%s199 + $0x30] sm:$0xff]
                  %208 = vst [vmem:[%s200 + $0x18] sm:$0xff] %v207
                  %v209 = vld [vmem:[%s199 + $0x40] sm:$0xff]
                  %210 = vst [vmem:[%s200 + $0x20] sm:$0xff] %v209
                  %v211 = vld [vmem:[%s199 + $0x50] sm:$0xff]
                  %212 = vst [vmem:[%s200 + $0x28] sm:$0xff] %v211
                  %v213 = vld [vmem:[%s199 + $0x60] sm:$0xff]
                  %214 = vst [vmem:[%s200 + $0x30] sm:$0xff] %v213
                  %v215 = vld [vmem:[%s199 + $0x70] sm:$0xff]
                  %216 = vst [vmem:[%s200 + $0x38] sm:$0xff] %v215
                  %v217 = vld [vmem:[%s199 + $0x80] sm:$0xff]
                  %218 = vst [vmem:[%s200 + $0x40] sm:$0xff] %v217
                  %v219 = vld [vmem:[%s199 + $0x90] sm:$0xff]
                  %220 = vst [vmem:[%s200 + $0x48] sm:$0xff] %v219
                  %v221 = vld [vmem:[%s199 + $0xa0] sm:$0xff]
                  %222 = vst [vmem:[%s200 + $0x50] sm:$0xff] %v221
                  %v223 = vld [vmem:[%s199 + $0xb0] sm:$0xff]
                  %224 = vst [vmem:[%s200 + $0x58] sm:$0xff] %v223
                  %v225 = vld [vmem:[%s199 + $0xc0] sm:$0xff]
                  %226 = vst [vmem:[%s200 + $0x60] sm:$0xff] %v225
                  %v227 = vld [vmem:[%s199 + $0xd0] sm:$0xff]
                  %228 = vst [vmem:[%s200 + $0x68] sm:$0xff] %v227
                  %v229 = vld [vmem:[%s199 + $0xe0] sm:$0xff]
                  %230 = vst [vmem:[%s200 + $0x70] sm:$0xff] %v229
                  %v231 = vld [vmem:[%s199 + $0xf0] sm:$0xff]
                  %232 = vst [vmem:[%s200 + $0x78] sm:$0xff] %v231
                  %v233 = vld [vmem:[%s199 + $0x100] sm:$0xff]
                  %234 = vst [vmem:[%s200 + $0x80] sm:$0xff] %v233
                  %v235 = vld [vmem:[%s199 + $0x110] sm:$0xff]
                  %236 = vst [vmem:[%s200 + $0x88] sm:$0xff] %v235
                  %v237 = vld [vmem:[%s199 + $0x120] sm:$0xff]
                  %238 = vst [vmem:[%s200 + $0x90] sm:$0xff] %v237
                $region56: #{lenet5_forward.4} parent=50 // loop_footer
                  %s198 = sadd.s32 1, %s194
                $region57: #{lenet5_forward.4} parent=50 // loop_footer_branch
                  %193 = sbr.rel target = $region53
                $region58: #{lenet5_forward.4} parent=50 // loop_exit
                  _
              $region51: #{lenet5_forward.4} parent=35 // pred_fallthru
                _
              // Predicated region
              $region59: #{lenet5_forward.4} parent=35 // pred_check
                _
              $region60: #{lenet5_forward.4} parent=35 // pred_check_branch
                %240 = sbr.rel target = $region62
              $region61: #{lenet5_forward.4} parent=35 // pred_region
                _
              $region62: #{lenet5_forward.4} parent=35 // pred_fallthru
                _
            $region36: #{lenet5_forward.4} parent=31 // pred_fallthru
              _
            // Predicated region
            $region37: #{lenet5_forward.4} parent=31 // pred_check
              _
            $region38: #{lenet5_forward.4} parent=31 // pred_check_branch
              %142 = sbr.rel target = $region40
            $region39: #{lenet5_forward.4} parent=31 // pred_region
              %s144 = ssub.s32 256, 1
              loop: start=0, step=1, limit=1
              $region41: #{lenet5_forward.4} parent=39 // loop_pre_header
                _
              $region42: #{lenet5_forward.4} parent=39 // loop_header
                %s146 = sphi 0, %s150
                %p147 = scmp.ge.s32.totalorder %s146, 1
                %s151 = sphi %s136, %s136
                %s152 = sphi %s134, %s134
              $region43: #{lenet5_forward.4} parent=39 // loop_header_branch
                %149 = sbr.rel (%p147) target = $region47
              $region44: #{lenet5_forward.4} parent=39 // loop_body
                %v153 = vld [vmem:[%s151] sm:%s144]
                %154 = vst [vmem:[%s152] sm:%s144] %v153
                %v155 = vld [vmem:[%s151 + $0x10] sm:%s144]
                %156 = vst [vmem:[%s152 + $0x8] sm:%s144] %v155
                %v157 = vld [vmem:[%s151 + $0x20] sm:%s144]
                %158 = vst [vmem:[%s152 + $0x10] sm:%s144] %v157
                %v159 = vld [vmem:[%s151 + $0x30] sm:%s144]
                %160 = vst [vmem:[%s152 + $0x18] sm:%s144] %v159
                %v161 = vld [vmem:[%s151 + $0x40] sm:%s144]
                %162 = vst [vmem:[%s152 + $0x20] sm:%s144] %v161
                %v163 = vld [vmem:[%s151 + $0x50] sm:%s144]
                %164 = vst [vmem:[%s152 + $0x28] sm:%s144] %v163
                %v165 = vld [vmem:[%s151 + $0x60] sm:%s144]
                %166 = vst [vmem:[%s152 + $0x30] sm:%s144] %v165
                %v167 = vld [vmem:[%s151 + $0x70] sm:%s144]
                %168 = vst [vmem:[%s152 + $0x38] sm:%s144] %v167
                %v169 = vld [vmem:[%s151 + $0x80] sm:%s144]
                %170 = vst [vmem:[%s152 + $0x40] sm:%s144] %v169
                %v171 = vld [vmem:[%s151 + $0x90] sm:%s144]
                %172 = vst [vmem:[%s152 + $0x48] sm:%s144] %v171
                %v173 = vld [vmem:[%s151 + $0xa0] sm:%s144]
                %174 = vst [vmem:[%s152 + $0x50] sm:%s144] %v173
                %v175 = vld [vmem:[%s151 + $0xb0] sm:%s144]
                %176 = vst [vmem:[%s152 + $0x58] sm:%s144] %v175
                %v177 = vld [vmem:[%s151 + $0xc0] sm:%s144]
                %178 = vst [vmem:[%s152 + $0x60] sm:%s144] %v177
                %v179 = vld [vmem:[%s151 + $0xd0] sm:%s144]
                %180 = vst [vmem:[%s152 + $0x68] sm:%s144] %v179
                %v181 = vld [vmem:[%s151 + $0xe0] sm:%s144]
                %182 = vst [vmem:[%s152 + $0x70] sm:%s144] %v181
                %v183 = vld [vmem:[%s151 + $0xf0] sm:%s144]
                %184 = vst [vmem:[%s152 + $0x78] sm:%s144] %v183
                %v185 = vld [vmem:[%s151 + $0x100] sm:%s144]
                %186 = vst [vmem:[%s152 + $0x80] sm:%s144] %v185
                %v187 = vld [vmem:[%s151 + $0x110] sm:%s144]
                %188 = vst [vmem:[%s152 + $0x88] sm:%s144] %v187
                %v189 = vld [vmem:[%s151 + $0x120] sm:%s144]
                %190 = vst [vmem:[%s152 + $0x90] sm:%s144] %v189
              $region45: #{lenet5_forward.4} parent=39 // loop_footer
                %s150 = sadd.s32 1, %s146
              $region46: #{lenet5_forward.4} parent=39 // loop_footer_branch
                %145 = sbr.rel target = $region42
              $region47: #{lenet5_forward.4} parent=39 // loop_exit
                _
            $region40: #{lenet5_forward.4} parent=31 // pred_fallthru
              _
          $region32: #{lenet5_forward.4} parent=27 // pred_fallthru
            _
          %241 = vnop
        $region28: #{lenet5_forward.4} parent=23 // pred_fallthru
          _
      $region24: #{lenet5_forward.4} parent=5 // pred_fallthru
        _
      %p242 = scmp.le.s32.totalorder 1, %s9
      %p243 = scmp.lt.s32.totalorder %s9, 3
      %p244 = pnand %p242, %p243
      %p245 = pneg %p244
      // Predicated region
      $region63: #{lenet5_forward.4} parent=5 // pred_check
        _
      $region64: #{lenet5_forward.4} parent=5 // pred_check_branch
        %247 = sbr.rel (%p244) target = $region66
      $region65: #{lenet5_forward.4} parent=5 // pred_region
        %s248 = ssub.s32 %s9, 1
        %s249 = sand.u32 %s64, 1
        %s250 = sand.u32 %s64, 1
        %s251 = smul.addr %s250, 152
        %s252 = scalar_lea.vmem [#allocation2], %s251
        // Predicated region
        $region67: #{lenet5_forward.4} parent=65 // pred_check
          %p253 = pneg %p77
        $region68: #{lenet5_forward.4} parent=65 // pred_check_branch
          %255 = sbr.rel (%p253) target = $region70
        $region69: #{lenet5_forward.4} parent=65 // pred_region
          _
        $region70: #{lenet5_forward.4} parent=65 // pred_fallthru
          _
        %p256 = pneg %p30
        %p257 = pneg %p27
        %p258 = pneg %p51
        %p259 = pneg %p48
        %s260 = sand.u32 %s64, 1
        %s261 = sand.u32 %s64, 1
        %s262 = smul.addr %s261, 152
        %s263 = scalar_lea.vmem [#allocation2], %s262
        %p264 = pneg %p77
        %p265 = pneg %p74
        %p266 = pneg %p103
        %p267 = pneg %p100
        %s268 = sand.u32 %s90, 1
        %s269 = sand.u32 %s90, 1
        %s270 = smul.addr %s269, 16
        %s271 = scalar_lea.vmem [#allocation3], %s270
        %v272 = vld [vmem:[%s0] sm:$0xff]
        %v273 = vld [vmem:[%s0 + $0x8] sm:$0xff]
        %v274 = vld [vmem:[%s0 + $0x10] sm:$0xff]
        %v275 = vld [vmem:[%s0 + $0x18] sm:$0xff]
        %v276 = vld [vmem:[%s252] sm:$0xff]
        %v277 = vld [vmem:[%s252 + $0x8] sm:$0xff]
        %v278 = vld [vmem:[%s252 + $0x10] sm:$0xff]
        %v279 = vld [vmem:[%s252 + $0x18] sm:$0xff]
        %v280 = vld [vmem:[%s252 + $0x20] sm:$0xff]
        %v281 = vld [vmem:[%s252 + $0x28] sm:$0xff]
        %v282 = vld [vmem:[%s252 + $0x30] sm:$0xff]
        %v283 = vld [vmem:[%s252 + $0x38] sm:$0xff]
        %v284 = vld [vmem:[%s252 + $0x40] sm:$0xff]
        %v285 = vld [vmem:[%s252 + $0x48] sm:$0xff]
        %v286 = vld [vmem:[%s252 + $0x50] sm:$0xff]
        %v287 = vld [vmem:[%s252 + $0x58] sm:$0xff]
        %v288 = vld [vmem:[%s252 + $0x60] sm:$0xff]
        %v289 = vld [vmem:[%s252 + $0x68] sm:$0xff]
        %v290 = vld [vmem:[%s252 + $0x70] sm:$0xff]
        %v291 = vld [vmem:[%s252 + $0x78] sm:$0xff]
        %v292 = vld [vmem:[%s252 + $0x80] sm:$0xff]
        %v293 = vld [vmem:[%s252 + $0x88] sm:$0xff]
        %v294 = vld [vmem:[%s252 + $0x90] sm:$0xff]
        %v295 = vld [vmem:[%s1] sm:$0xff]
        %v296 = vld [vmem:[%s1 + $0x8] sm:$0xff]
        %298 = vset.pattern.permute.xlu0 0
        %299 = vperm.xlu0 %298, %v295
        %v300 = vpop.permute.xlu0 %299
        %303 = vset.pattern.permute.xlu0 0
        %304 = vperm.xlu0 %303, %v296
        %v305 = vpop.permute.xlu0 %304
        %vm307 = vcmask 195584
        %v309 = vsel %vm307, %v273, 0
        %v312 = vsel %vm307, %v275, 0
        %314 = vmatprep.subr.mxu0 0.0
        %315 = vmatpush1.msra.mxu0 %v291
        %316 = vmatprep.subr.mxu0 0.0
        %317 = vmatpush1.msra.mxu0 %v290
        %318 = vmatprep.subr.mxu0 0.0
        %319 = vmatpush1.msra.mxu0 %v289
        %320 = vmatprep.subr.mxu0 0.0
        %321 = vmatpush1.msra.mxu0 %v288
        %322 = vmatprep.subr.mxu0 0.0
        %323 = vmatpush1.msra.mxu0 %v287
        %324 = vmatprep.subr.mxu0 0.0
        %325 = vmatpush1.msra.mxu0 %v286
        %326 = vmatprep.subr.mxu0 0.0
        %327 = vmatpush1.msra.mxu0 %v285
        %328 = vmatprep.subr.mxu0 0.0
        %329 = vmatpush1.msra.mxu0 %v284
        %330 = vmatprep.subr.mxu0 0.0
        %331 = vmatpush1.msra.mxu0 %v283
        %332 = vmatprep.subr.mxu0 0.0
        %333 = vmatpush1.msra.mxu0 %v282
        %334 = vmatprep.subr.mxu0 0.0
        %335 = vmatpush1.msra.mxu0 %v281
        %336 = vmatprep.subr.mxu0 0.0
        %337 = vmatpush1.msra.mxu0 %v280
        %338 = vmatprep.subr.mxu0 0.0
        %339 = vmatpush1.msra.mxu0 %v279
        %340 = vmatprep.subr.mxu0 0.0
        %341 = vmatpush1.msra.mxu0 %v278
        %342 = vmatprep.subr.mxu0 0.0
        %343 = vmatpush1.msra.mxu0 %v277
        %344 = vmatprep.subr.mxu0 0.0
        %345 = vmatpush1.msra.mxu0 %v276
        %346 = vmatprep.subr.mxu0 0.0
        %347 = vmatpush2.msra.mxu0 0.0
        %348 = vmatprep.subr.mxu0 0.0
        %349 = vmatpush2.msra.mxu0 0.0
        %350 = vmatprep.subr.mxu0 0.0
        %351 = vmatpush2.msra.mxu0 0.0
        %352 = vmatprep.subr.mxu0 0.0
        %353 = vmatpush2.msra.mxu0 0.0
        %354 = vmatprep.subr.mxu0 0.0
        %355 = vmatpush2.msra.mxu0 0.0
        %356 = vmatprep.subr.mxu0 0.0
        %357 = vmatpush2.msra.mxu0 0.0
        %358 = vmatprep.subr.mxu0 0.0
        %359 = vmatpush2.msra.mxu0 0.0
        %360 = vmatprep.subr.mxu0 0.0
        %361 = vmatpush2.msra.mxu0 0.0
        %362 = vmatprep.subr.mxu0 0.0
        %363 = vmatpush2.msra.mxu0 0.0
        %364 = vmatprep.subr.mxu0 0.0
        %365 = vmatpush2.msra.mxu0 0.0
        %366 = vmatprep.subr.mxu0 0.0
        %367 = vmatpush2.msra.mxu0 0.0
        %368 = vmatprep.subr.mxu0 0.0
        %369 = vmatpush2.msra.mxu0 0.0
        %370 = vmatprep.subr.mxu0 0.0
        %371 = vmatpush2.msra.mxu0 0.0
        %372 = vmatprep.subr.mxu0 0.0
        %373 = vmatpush2.msra.mxu0 %v294
        %374 = vmatprep.subr.mxu0 0.0
        %375 = vmatpush2.msra.mxu0 %v293
        %376 = vmatprep.subr.mxu0 0.0
        %377 = vmatpush2.msra.mxu0 %v292
        %378 = vmatprep.mubr.f32.mxu0 %v309
        %379 = vmatmul.mubr.f32.gmra.mxu0 %v272
        %v380 = vpop.f32.mrf.mxu0
        %v381 = vadd.f32 %v300, %v380
        %v382 = vpop.f32.mrf.mxu0
        %383 = vmatprep.mubr.f32.mxu0 %v312
        %384 = vmatmul.mubr.f32.gmra.mxu0 %v274
        %v385 = vpop.f32.mrf.mxu0
        %v386 = vadd.f32 %v305, %v385
        %v387 = vpop.f32.mrf.mxu0
        %388 = vdwg.mxu0
        %v389 = vtanh.pop %v381
        %v390 = vtanh.pop %v386
        %391 = vst [vmem:[%s271] sm:$0xff] %v389
        %392 = vst [vmem:[%s271 + $0x8] sm:$0xff] %v390
        %s393 = sand.u32 %s90, 1
        %s394 = sand.u32 %s90, 1
        %s395 = smul.addr %s394, 16
        %s396 = scalar_lea.vmem [#allocation3], %s395
        // Predicated region
        $region71: #{lenet5_forward.4} parent=65 // pred_check
          %p397 = pneg %p100
        $region72: #{lenet5_forward.4} parent=65 // pred_check_branch
          %399 = sbr.rel (%p397) target = $region74
        $region73: #{lenet5_forward.4} parent=65 // pred_region
          %s400 = smul.addr %s14, 8
          %s401 = scalar_lea.vmem %s3, %s400
          // Predicated region
          $region75: #{lenet5_forward.4} parent=73 // pred_check
            _
          $region76: #{lenet5_forward.4} parent=73 // pred_check_branch
            %403 = sbr.rel (0) target = $region78
          $region77: #{lenet5_forward.4} parent=73 // pred_region
            // Predicated region
            $region79: #{lenet5_forward.4} parent=77 // pred_check
              _
            $region80: #{lenet5_forward.4} parent=77 // pred_check_branch
              %405 = sbr.rel (0) target = $region82
            $region81: #{lenet5_forward.4} parent=77 // pred_region
              // Predicated region
              $region94: #{lenet5_forward.4} parent=81 // pred_check
                _
              $region95: #{lenet5_forward.4} parent=81 // pred_check_branch
                %423 = sbr.rel (0) target = $region97
              $region96: #{lenet5_forward.4} parent=81 // pred_region
                loop: start=0, step=1, limit=1
                $region98: #{lenet5_forward.4} parent=96 // loop_pre_header
                  _
                $region99: #{lenet5_forward.4} parent=96 // loop_header
                  %s425 = sphi 0, %s429
                  %p426 = scmp.ge.s32.totalorder %s425, 1
                  %s430 = sphi %s396, %s396
                  %s431 = sphi %s401, %s401
                $region100: #{lenet5_forward.4} parent=96 // loop_header_branch
                  %428 = sbr.rel (%p426) target = $region104
                $region101: #{lenet5_forward.4} parent=96 // loop_body
                  %v432 = vld [vmem:[%s430] sm:$0xff]
                  %433 = vst [vmem:[%s431] sm:$0xff] %v432
                  %v434 = vld [vmem:[%s430 + $0x8] sm:$0xff]
                  %435 = vst [vmem:[%s431 + $0x10] sm:$0xff] %v434
                $region102: #{lenet5_forward.4} parent=96 // loop_footer
                  %s429 = sadd.s32 1, %s425
                $region103: #{lenet5_forward.4} parent=96 // loop_footer_branch
                  %424 = sbr.rel target = $region99
                $region104: #{lenet5_forward.4} parent=96 // loop_exit
                  _
              $region97: #{lenet5_forward.4} parent=81 // pred_fallthru
                _
              // Predicated region
              $region105: #{lenet5_forward.4} parent=81 // pred_check
                _
              $region106: #{lenet5_forward.4} parent=81 // pred_check_branch
                %437 = sbr.rel target = $region108
              $region107: #{lenet5_forward.4} parent=81 // pred_region
                _
              $region108: #{lenet5_forward.4} parent=81 // pred_fallthru
                _
            $region82: #{lenet5_forward.4} parent=77 // pred_fallthru
              _
            // Predicated region
            $region83: #{lenet5_forward.4} parent=77 // pred_check
              _
            $region84: #{lenet5_forward.4} parent=77 // pred_check_branch
              %407 = sbr.rel target = $region86
            $region85: #{lenet5_forward.4} parent=77 // pred_region
              %s409 = ssub.s32 256, 1
              loop: start=0, step=1, limit=1
              $region87: #{lenet5_forward.4} parent=85 // loop_pre_header
                _
              $region88: #{lenet5_forward.4} parent=85 // loop_header
                %s411 = sphi 0, %s415
                %p412 = scmp.ge.s32.totalorder %s411, 1
                %s416 = sphi %s396, %s396
                %s417 = sphi %s401, %s401
              $region89: #{lenet5_forward.4} parent=85 // loop_header_branch
                %414 = sbr.rel (%p412) target = $region93
              $region90: #{lenet5_forward.4} parent=85 // loop_body
                %v418 = vld [vmem:[%s416] sm:%s409]
                %419 = vst [vmem:[%s417] sm:%s409] %v418
                %v420 = vld [vmem:[%s416 + $0x8] sm:%s409]
                %421 = vst [vmem:[%s417 + $0x10] sm:%s409] %v420
              $region91: #{lenet5_forward.4} parent=85 // loop_footer
                %s415 = sadd.s32 1, %s411
              $region92: #{lenet5_forward.4} parent=85 // loop_footer_branch
                %410 = sbr.rel target = $region88
              $region93: #{lenet5_forward.4} parent=85 // loop_exit
                _
            $region86: #{lenet5_forward.4} parent=77 // pred_fallthru
              _
          $region78: #{lenet5_forward.4} parent=73 // pred_fallthru
            _
          %438 = vnop
        $region74: #{lenet5_forward.4} parent=65 // pred_fallthru
          _
      $region66: #{lenet5_forward.4} parent=5 // pred_fallthru
        _
      %p439 = scmp.le.s32.totalorder 2, %s9
      // Predicated region
      $region109: #{lenet5_forward.4} parent=5 // pred_check
        %p440 = pneg %p439
      $region110: #{lenet5_forward.4} parent=5 // pred_check_branch
        %442 = sbr.rel (%p440) target = $region112
      $region111: #{lenet5_forward.4} parent=5 // pred_region
        %s443 = ssub.s32 %s9, 2
        // Predicated region
        $region113: #{lenet5_forward.4} parent=111 // pred_check
          %p444 = pneg %p106
        $region114: #{lenet5_forward.4} parent=111 // pred_check_branch
          %446 = sbr.rel (%p444) target = $region116
        $region115: #{lenet5_forward.4} parent=111 // pred_region
          %s447 = sand.u32 %s91, 1
          %s448 = sand.u32 %s91, 1
          %s449 = smul.addr %s448, 16
          %s450 = scalar_lea.vmem [#allocation3], %s449
        $region116: #{lenet5_forward.4} parent=111 // pred_fallthru
          _
      $region112: #{lenet5_forward.4} parent=5 // pred_fallthru
        _
    $region6: #{lenet5_forward.4} parent=1 // loop_footer
      %s13 = sadd.s32 1, %s9
    $region7: #{lenet5_forward.4} parent=1 // loop_footer_branch
      %8 = sbr.rel target = $region3
    $region8: #{lenet5_forward.4} parent=1 // loop_exit
      _

// kernel: lenet5_forward.5
$region0: #{lenet5_forward.5}
  #allocation0 [shape = 'u32[]', space=smem, size = 0x4, offset = 0x4, fixed_abs, tag = 'smem constant byte address 0x4 - core index']
  #allocation1 [shape = 'u32[144,128]{1,0:T(1,128)}', space=vmem, size = 0x12000, scoped, tag = 'internal scratch']
  %s0 = inlined_call_operand.vmem [shape: f32[8,400], index: 0, kind: input, shape index: {}]
  %s1 = inlined_call_operand.vmem [shape: f32[400,120], index: 1, kind: input, shape index: {}]
  %s2 = inlined_call_operand.vmem [shape: f32[1,120], index: 2, kind: input, shape index: {}]
  %s3 = inlined_call_operand.vmem [shape: f32[120,84], index: 3, kind: input, shape index: {}]
  %s4 = inlined_call_operand.vmem [shape: f32[1,84], index: 4, kind: input, shape index: {}]
  %s5 = inlined_call_operand.vmem [shape: f32[84,10], index: 5, kind: input, shape index: {}]
  %s6 = inlined_call_operand.vmem [shape: f32[1,10], index: 6, kind: input, shape index: {}]
  %s7 = inlined_call_operand.vmem [shape: f32[8,10], index: 7, kind: output, shape index: {0}]
  %s8 = inlined_call_operand.vmem [shape: f32[8,10], index: 8, kind: output, shape index: {1}]
  %9 = xla_tuple %s7, %s8
  %s10 = sld [smem:[#allocation0]]
  $region46: #{lenet5_forward.5} parent=0
    _
  %s12 = ssub.s32 1, %s10
  %s13 = scalar_select 0, %s12, %s10
  // Predicated region
  $region2: #{lenet5_forward.5} parent=0 // pred_check
    _
  $region3: #{lenet5_forward.5} parent=0 // pred_check_branch
    %15 = sbr.rel (0) target = $region5
  $region4: #{lenet5_forward.5} parent=0 // pred_region
    _
  $region5: #{lenet5_forward.5} parent=0 // pred_fallthru
    _
  // Predicated region
  $region6: #{lenet5_forward.5} parent=0 // pred_check
    _
  $region7: #{lenet5_forward.5} parent=0 // pred_check_branch
    %17 = sbr.rel (0) target = $region9
  $region8: #{lenet5_forward.5} parent=0 // pred_region
    _
  $region9: #{lenet5_forward.5} parent=0 // pred_fallthru
    _
  // Predicated region
  $region10: #{lenet5_forward.5} parent=0 // pred_check
    _
  $region11: #{lenet5_forward.5} parent=0 // pred_check_branch
    %19 = sbr.rel (0) target = $region13
  $region12: #{lenet5_forward.5} parent=0 // pred_region
    _
  $region13: #{lenet5_forward.5} parent=0 // pred_fallthru
    _
  // Predicated region
  $region14: #{lenet5_forward.5} parent=0 // pred_check
    _
  $region15: #{lenet5_forward.5} parent=0 // pred_check_branch
    %21 = sbr.rel (0) target = $region17
  $region16: #{lenet5_forward.5} parent=0 // pred_region
    _
  $region17: #{lenet5_forward.5} parent=0 // pred_fallthru
    _
  // Predicated region
  $region18: #{lenet5_forward.5} parent=0 // pred_check
    _
  $region19: #{lenet5_forward.5} parent=0 // pred_check_branch
    %23 = sbr.rel (0) target = $region21
  $region20: #{lenet5_forward.5} parent=0 // pred_region
    _
  $region21: #{lenet5_forward.5} parent=0 // pred_fallthru
    _
  // Predicated region
  $region22: #{lenet5_forward.5} parent=0 // pred_check
    _
  $region23: #{lenet5_forward.5} parent=0 // pred_check_branch
    %25 = sbr.rel (0) target = $region25
  $region24: #{lenet5_forward.5} parent=0 // pred_region
    _
  $region25: #{lenet5_forward.5} parent=0 // pred_fallthru
    _
  // Predicated region
  $region26: #{lenet5_forward.5} parent=0 // pred_check
    _
  $region27: #{lenet5_forward.5} parent=0 // pred_check_branch
    %27 = sbr.rel (0) target = $region29
  $region28: #{lenet5_forward.5} parent=0 // pred_region
    _
  $region29: #{lenet5_forward.5} parent=0 // pred_fallthru
    _
  %v28 = vld [vmem:[%s0] sm:$0xff]
  %v29 = vld [vmem:[%s0 + $0x8] sm:$0xff]
  %v30 = vld [vmem:[%s0 + $0x10] sm:$0xff]
  %v31 = vld [vmem:[%s0 + $0x18] sm:$0xff]
  %v32 = vld [vmem:[%s1] sm:$0xff]
  %v33 = vld [vmem:[%s1 + $0x8] sm:$0xff]
  %v34 = vld [vmem:[%s1 + $0x10] sm:$0xff]
  %v35 = vld [vmem:[%s1 + $0x18] sm:$0xff]
  %v36 = vld [vmem:[%s1 + $0x20] sm:$0xff]
  %v37 = vld [vmem:[%s1 + $0x28] sm:$0xff]
  %v38 = vld [vmem:[%s1 + $0x30] sm:$0xff]
  %v39 = vld [vmem:[%s1 + $0x38] sm:$0xff]
  %v40 = vld [vmem:[%s1 + $0x40] sm:$0xff]
  %v41 = vld [vmem:[%s1 + $0x48] sm:$0xff]
  %v42 = vld [vmem:[%s1 + $0x50] sm:$0xff]
  %v43 = vld [vmem:[%s1 + $0x58] sm:$0xff]
  %v44 = vld [vmem:[%s1 + $0x60] sm:$0xff]
  %v45 = vld [vmem:[%s1 + $0x68] sm:$0xff]
  %v46 = vld [vmem:[%s1 + $0x70] sm:$0xff]
  %v47 = vld [vmem:[%s1 + $0x78] sm:$0xff]
  %v48 = vld [vmem:[%s1 + $0x80] sm:$0xff]
  %v49 = vld [vmem:[%s1 + $0x88] sm:$0xff]
  %v50 = vld [vmem:[%s1 + $0x90] sm:$0xff]
  %v51 = vld [vmem:[%s1 + $0x98] sm:$0xff]
  %v52 = vld [vmem:[%s1 + $0xa0] sm:$0xff]
  %v53 = vld [vmem:[%s1 + $0xa8] sm:$0xff]
  %v54 = vld [vmem:[%s1 + $0xb0] sm:$0xff]
  %v55 = vld [vmem:[%s1 + $0xb8] sm:$0xff]
  %v56 = vld [vmem:[%s1 + $0xc0] sm:$0xff]
  %v57 = vld [vmem:[%s1 + $0xc8] sm:$0xff]
  %v58 = vld [vmem:[%s1 + $0xd0] sm:$0xff]
  %v59 = vld [vmem:[%s1 + $0xd8] sm:$0xff]
  %v60 = vld [vmem:[%s1 + $0xe0] sm:$0xff]
  %v61 = vld [vmem:[%s1 + $0xe8] sm:$0xff]
  %v62 = vld [vmem:[%s1 + $0xf0] sm:$0xff]
  %v63 = vld [vmem:[%s1 + $0xf8] sm:$0xff]
  %v64 = vld [vmem:[%s1 + $0x100] sm:$0xff]
  %v65 = vld [vmem:[%s1 + $0x108] sm:$0xff]
  %v66 = vld [vmem:[%s1 + $0x110] sm:$0xff]
  %v67 = vld [vmem:[%s1 + $0x118] sm:$0xff]
  %v68 = vld [vmem:[%s1 + $0x120] sm:$0xff]
  %v69 = vld [vmem:[%s1 + $0x128] sm:$0xff]
  %v70 = vld [vmem:[%s1 + $0x130] sm:$0xff]
  %v71 = vld [vmem:[%s1 + $0x138] sm:$0xff]
  %v72 = vld [vmem:[%s1 + $0x140] sm:$0xff]
  %v73 = vld [vmem:[%s1 + $0x148] sm:$0xff]
  %v74 = vld [vmem:[%s1 + $0x150] sm:$0xff]
  %v75 = vld [vmem:[%s1 + $0x158] sm:$0xff]
  %v76 = vld [vmem:[%s1 + $0x160] sm:$0xff]
  %v77 = vld [vmem:[%s1 + $0x168] sm:$0xff]
  %v78 = vld [vmem:[%s1 + $0x170] sm:$0xff]
  %v79 = vld [vmem:[%s1 + $0x178] sm:$0xff]
  %v80 = vld [vmem:[%s1 + $0x180] sm:$0xff]
  %v81 = vld [vmem:[%s1 + $0x188] sm:$0xff]
  %v82 = vld [vmem:[%s2] sm:$0x1]
  %v84 = vlaneseq
  %v85 = vshrl.u32 %v84, 7
  %v86 = vsub.s32 0, %v85
  %v87 = vrot.slane %v82, %v86
  %vm89 = vcmask 130048
  %v91 = vsel %vm89, %v31, 0
  %93 = vmatprep.subr.mxu0 0.0
  %94 = vmatpush1.msra.mxu0 %v47
  %95 = vmatprep.subr.mxu0 0.0
  %96 = vmatpush1.msra.mxu0 %v46
  %97 = vmatprep.subr.mxu0 0.0
  %98 = vmatpush1.msra.mxu0 %v45
  %99 = vmatprep.subr.mxu0 0.0
  %100 = vmatpush1.msra.mxu0 %v44
  %101 = vmatprep.subr.mxu0 0.0
  %102 = vmatpush1.msra.mxu0 %v43
  %103 = vmatprep.subr.mxu0 0.0
  %104 = vmatpush1.msra.mxu0 %v42
  %105 = vmatprep.subr.mxu0 0.0
  %106 = vmatpush1.msra.mxu0 %v41
  %107 = vmatprep.subr.mxu0 0.0
  %108 = vmatpush1.msra.mxu0 %v40
  %109 = vmatprep.subr.mxu0 0.0
  %110 = vmatpush1.msra.mxu0 %v39
  %111 = vmatprep.subr.mxu0 0.0
  %112 = vmatpush1.msra.mxu0 %v38
  %113 = vmatprep.subr.mxu0 0.0
  %114 = vmatpush1.msra.mxu0 %v37
  %115 = vmatprep.subr.mxu0 0.0
  %116 = vmatpush1.msra.mxu0 %v36
  %117 = vmatprep.subr.mxu0 0.0
  %118 = vmatpush1.msra.mxu0 %v35
  %119 = vmatprep.subr.mxu0 0.0
  %120 = vmatpush1.msra.mxu0 %v34
  %121 = vmatprep.subr.mxu0 0.0
  %122 = vmatpush1.msra.mxu0 %v33
  %123 = vmatprep.subr.mxu0 0.0
  %124 = vmatpush1.msra.mxu0 %v32
  %125 = vmatprep.subr.mxu0 0.0
  %126 = vmatpush2.msra.mxu0 %v63
  %127 = vmatprep.subr.mxu0 0.0
  %128 = vmatpush2.msra.mxu0 %v62
  %129 = vmatprep.subr.mxu0 0.0
  %130 = vmatpush2.msra.mxu0 %v61
  %131 = vmatprep.subr.mxu0 0.0
  %132 = vmatpush2.msra.mxu0 %v60
  %133 = vmatprep.subr.mxu0 0.0
  %134 = vmatpush2.msra.mxu0 %v59
  %135 = vmatprep.subr.mxu0 0.0
  %136 = vmatpush2.msra.mxu0 %v58
  %137 = vmatprep.subr.mxu0 0.0
  %138 = vmatpush2.msra.mxu0 %v57
  %139 = vmatprep.subr.mxu0 0.0
  %140 = vmatpush2.msra.mxu0 %v56
  %141 = vmatprep.subr.mxu0 0.0
  %142 = vmatpush2.msra.mxu0 %v55
  %143 = vmatprep.subr.mxu0 0.0
  %144 = vmatpush2.msra.mxu0 %v54
  %145 = vmatprep.subr.mxu0 0.0
  %146 = vmatpush2.msra.mxu0 %v53
  %147 = vmatprep.subr.mxu0 0.0
  %148 = vmatpush2.msra.mxu0 %v52
  %149 = vmatprep.subr.mxu0 0.0
  %150 = vmatpush2.msra.mxu0 %v51
  %151 = vmatprep.subr.mxu0 0.0
  %152 = vmatpush2.msra.mxu0 %v50
  %153 = vmatprep.subr.mxu0 0.0
  %154 = vmatpush2.msra.mxu0 %v49
  %155 = vmatprep.subr.mxu0 0.0
  %156 = vmatpush2.msra.mxu0 %v48
  %157 = vmatprep.mubr.f32.mxu0 %v29
  %158 = vmatmul.mubr.f32.gmra.mxu0 %v28
  %v159 = vpop.f32.mrf.mxu0
  %v160 = vadd.f32 %v87, %v159
  %v161 = vpop.f32.mrf.mxu0
  %162 = vdwg.mxu0
  %163 = vmatprep.subr.mxu0 0.0
  %164 = vmatpush1.msra.mxu0 %v79
  %165 = vmatprep.subr.mxu0 0.0
  %166 = vmatpush1.msra.mxu0 %v78
  %167 = vmatprep.subr.mxu0 0.0
  %168 = vmatpush1.msra.mxu0 %v77
  %169 = vmatprep.subr.mxu0 0.0
  %170 = vmatpush1.msra.mxu0 %v76
  %171 = vmatprep.subr.mxu0 0.0
  %172 = vmatpush1.msra.mxu0 %v75
  %173 = vmatprep.subr.mxu0 0.0
  %174 = vmatpush1.msra.mxu0 %v74
  %175 = vmatprep.subr.mxu0 0.0
  %176 = vmatpush1.msra.mxu0 %v73
  %177 = vmatprep.subr.mxu0 0.0
  %178 = vmatpush1.msra.mxu0 %v72
  %179 = vmatprep.subr.mxu0 0.0
  %180 = vmatpush1.msra.mxu0 %v71
  %181 = vmatprep.subr.mxu0 0.0
  %182 = vmatpush1.msra.mxu0 %v70
  %183 = vmatprep.subr.mxu0 0.0
  %184 = vmatpush1.msra.mxu0 %v69
  %185 = vmatprep.subr.mxu0 0.0
  %186 = vmatpush1.msra.mxu0 %v68
  %187 = vmatprep.subr.mxu0 0.0
  %188 = vmatpush1.msra.mxu0 %v67
  %189 = vmatprep.subr.mxu0 0.0
  %190 = vmatpush1.msra.mxu0 %v66
  %191 = vmatprep.subr.mxu0 0.0
  %192 = vmatpush1.msra.mxu0 %v65
  %193 = vmatprep.subr.mxu0 0.0
  %194 = vmatpush1.msra.mxu0 %v64
  %195 = vmatprep.subr.mxu0 0.0
  %196 = vmatpush2.msra.mxu0 0.0
  %197 = vmatprep.subr.mxu0 0.0
  %198 = vmatpush2.msra.mxu0 0.0
  %199 = vmatprep.subr.mxu0 0.0
  %200 = vmatpush2.msra.mxu0 0.0
  %201 = vmatprep.subr.mxu0 0.0
  %202 = vmatpush2.msra.mxu0 0.0
  %203 = vmatprep.subr.mxu0 0.0
  %204 = vmatpush2.msra.mxu0 0.0
  %205 = vmatprep.subr.mxu0 0.0
  %206 = vmatpush2.msra.mxu0 0.0
  %207 = vmatprep.subr.mxu0 0.0
  %208 = vmatpush2.msra.mxu0 0.0
  %209 = vmatprep.subr.mxu0 0.0
  %210 = vmatpush2.msra.mxu0 0.0
  %211 = vmatprep.subr.mxu0 0.0
  %212 = vmatpush2.msra.mxu0 0.0
  %213 = vmatprep.subr.mxu0 0.0
  %214 = vmatpush2.msra.mxu0 0.0
  %215 = vmatprep.subr.mxu0 0.0
  %216 = vmatpush2.msra.mxu0 0.0
  %217 = vmatprep.subr.mxu0 0.0
  %218 = vmatpush2.msra.mxu0 0.0
  %219 = vmatprep.subr.mxu0 0.0
  %220 = vmatpush2.msra.mxu0 0.0
  %221 = vmatprep.subr.mxu0 0.0
  %222 = vmatpush2.msra.mxu0 0.0
  %223 = vmatprep.subr.mxu0 0.0
  %224 = vmatpush2.msra.mxu0 %v81
  %225 = vmatprep.subr.mxu0 0.0
  %226 = vmatpush2.msra.mxu0 %v80
  %227 = vmatprep.mubr.f32.mxu0 %v91
  %228 = vmatmul.mubr.f32.gmra.mxu0 %v30
  %v229 = vpop.f32.mrf.mxu0
  %v230 = vadd.f32 %v160, %v229
  %v231 = vpop.f32.mrf.mxu0
  %232 = vdwg.mxu0
  %v233 = vtanh.pop %v230
  %v234 = vld [vmem:[%s3] sm:$0xff]
  %v235 = vld [vmem:[%s3 + $0x8] sm:$0xff]
  %v236 = vld [vmem:[%s3 + $0x10] sm:$0xff]
  %v237 = vld [vmem:[%s3 + $0x18] sm:$0xff]
  %v238 = vld [vmem:[%s3 + $0x20] sm:$0xff]
  %v239 = vld [vmem:[%s3 + $0x28] sm:$0xff]
  %v240 = vld [vmem:[%s3 + $0x30] sm:$0xff]
  %v241 = vld [vmem:[%s3 + $0x38] sm:$0xff]
  %v242 = vld [vmem:[%s3 + $0x40] sm:$0xff]
  %v243 = vld [vmem:[%s3 + $0x48] sm:$0xff]
  %v244 = vld [vmem:[%s3 + $0x50] sm:$0xff]
  %v245 = vld [vmem:[%s3 + $0x58] sm:$0xff]
  %v246 = vld [vmem:[%s3 + $0x60] sm:$0xff]
  %v247 = vld [vmem:[%s3 + $0x68] sm:$0xff]
  %v248 = vld [vmem:[%s3 + $0x70] sm:$0xff]
  %v249 = vld [vmem:[%s4] sm:$0x1]
  %v251 = vlaneseq
  %v252 = vshrl.u32 %v251, 7
  %v253 = vsub.s32 0, %v252
  %v254 = vrot.slane %v249, %v253
  %vm256 = vcmask 982016
  %v258 = vsel %vm256, %v233, 0
  %260 = vmatprep.subr.mxu0 0.0
  %261 = vmatpush1.msra.mxu0 0.0
  %262 = vmatprep.subr.mxu0 0.0
  %263 = vmatpush1.msra.mxu0 %v248
  %264 = vmatprep.subr.mxu0 0.0
  %265 = vmatpush1.msra.mxu0 %v247
  %266 = vmatprep.subr.mxu0 0.0
  %267 = vmatpush1.msra.mxu0 %v246
  %268 = vmatprep.subr.mxu0 0.0
  %269 = vmatpush1.msra.mxu0 %v245
  %270 = vmatprep.subr.mxu0 0.0
  %271 = vmatpush1.msra.mxu0 %v244
  %272 = vmatprep.subr.mxu0 0.0
  %273 = vmatpush1.msra.mxu0 %v243
  %274 = vmatprep.subr.mxu0 0.0
  %275 = vmatpush1.msra.mxu0 %v242
  %276 = vmatprep.subr.mxu0 0.0
  %277 = vmatpush1.msra.mxu0 %v241
  %278 = vmatprep.subr.mxu0 0.0
  %279 = vmatpush1.msra.mxu0 %v240
  %280 = vmatprep.subr.mxu0 0.0
  %281 = vmatpush1.msra.mxu0 %v239
  %282 = vmatprep.subr.mxu0 0.0
  %283 = vmatpush1.msra.mxu0 %v238
  %284 = vmatprep.subr.mxu0 0.0
  %285 = vmatpush1.msra.mxu0 %v237
  %286 = vmatprep.subr.mxu0 0.0
  %287 = vmatpush1.msra.mxu0 %v236
  %288 = vmatprep.subr.mxu0 0.0
  %289 = vmatpush1.msra.mxu0 %v235
  %290 = vmatprep.subr.mxu0 0.0
  %291 = vmatpush1.msra.mxu0 %v234
  %292 = vmatprep.subr.mxu0 0.0
  %293 = vmatpush2.msra.mxu0 0.0
  %294 = vmatprep.subr.mxu0 0.0
  %295 = vmatpush2.msra.mxu0 0.0
  %296 = vmatprep.subr.mxu0 0.0
  %297 = vmatpush2.msra.mxu0 0.0
  %298 = vmatprep.subr.mxu0 0.0
  %299 = vmatpush2.msra.mxu0 0.0
  %300 = vmatprep.subr.mxu0 0.0
  %301 = vmatpush2.msra.mxu0 0.0
  %302 = vmatprep.subr.mxu0 0.0
  %303 = vmatpush2.msra.mxu0 0.0
  %304 = vmatprep.subr.mxu0 0.0
  %305 = vmatpush2.msra.mxu0 0.0
  %306 = vmatprep.subr.mxu0 0.0
  %307 = vmatpush2.msra.mxu0 0.0
  %308 = vmatprep.subr.mxu0 0.0
  %309 = vmatpush2.msra.mxu0 0.0
  %310 = vmatprep.subr.mxu0 0.0
  %311 = vmatpush2.msra.mxu0 0.0
  %312 = vmatprep.subr.mxu0 0.0
  %313 = vmatpush2.msra.mxu0 0.0
  %314 = vmatprep.subr.mxu0 0.0
  %315 = vmatpush2.msra.mxu0 0.0
  %316 = vmatprep.subr.mxu0 0.0
  %317 = vmatpush2.msra.mxu0 0.0
  %318 = vmatprep.subr.mxu0 0.0
  %319 = vmatpush2.msra.mxu0 0.0
  %320 = vmatprep.subr.mxu0 0.0
  %321 = vmatpush2.msra.mxu0 0.0
  %322 = vmatprep.subr.mxu0 0.0
  %323 = vmatpush2.msra.mxu0 0.0
  %324 = vmatprep.mubr.f32.mxu0 0.0
  %325 = vmatmul.mubr.f32.gmra.mxu0 %v258
  %v326 = vpop.f32.mrf.mxu0
  %v327 = vadd.f32 %v254, %v326
  %v328 = vpop.f32.mrf.mxu0
  %329 = vdwg.mxu0
  %v330 = vtanh.pop %v327
  %v331 = vld [vmem:[%s5] sm:$0xff]
  %v332 = vld [vmem:[%s5 + $0x8] sm:$0xff]
  %v333 = vld [vmem:[%s5 + $0x10] sm:$0xff]
  %v334 = vld [vmem:[%s5 + $0x18] sm:$0xff]
  %v335 = vld [vmem:[%s5 + $0x20] sm:$0xff]
  %v336 = vld [vmem:[%s5 + $0x28] sm:$0xff]
  %v337 = vld [vmem:[%s5 + $0x30] sm:$0xff]
  %v338 = vld [vmem:[%s5 + $0x38] sm:$0xff]
  %v339 = vld [vmem:[%s5 + $0x40] sm:$0xff]
  %v340 = vld [vmem:[%s5 + $0x48] sm:$0xff]
  %v341 = vld [vmem:[%s5 + $0x50] sm:$0xf]
  %v342 = vld [vmem:[%s6] sm:$0x1]
  %v344 = vlaneseq
  %v345 = vshrl.u32 %v344, 7
  %v346 = vsub.s32 0, %v345
  %v347 = vrot.slane %v342, %v346
  %vm349 = vcmask 687104
  %v351 = vsel %vm349, %v330, 0
  %vm353 = vcmask 1043456
  %v355 = vsel %vm353, %v341, 0
  %357 = vmatprep.subr.mxu0 0.0
  %358 = vmatpush1.msra.mxu0 0.0
  %359 = vmatprep.subr.mxu0 0.0
  %360 = vmatpush1.msra.mxu0 0.0
  %361 = vmatprep.subr.mxu0 0.0
  %362 = vmatpush1.msra.mxu0 0.0
  %363 = vmatprep.subr.mxu0 0.0
  %364 = vmatpush1.msra.mxu0 0.0
  %365 = vmatprep.subr.mxu0 0.0
  %366 = vmatpush1.msra.mxu0 0.0
  %367 = vmatprep.subr.mxu0 0.0
  %368 = vmatpush1.msra.mxu0 %v355
  %369 = vmatprep.subr.mxu0 0.0
  %370 = vmatpush1.msra.mxu0 %v340
  %371 = vmatprep.subr.mxu0 0.0
  %372 = vmatpush1.msra.mxu0 %v339
  %373 = vmatprep.subr.mxu0 0.0
  %374 = vmatpush1.msra.mxu0 %v338
  %375 = vmatprep.subr.mxu0 0.0
  %376 = vmatpush1.msra.mxu0 %v337
  %377 = vmatprep.subr.mxu0 0.0
  %378 = vmatpush1.msra.mxu0 %v336
  %379 = vmatprep.subr.mxu0 0.0
  %380 = vmatpush1.msra.mxu0 %v335
  %381 = vmatprep.subr.mxu0 0.0
  %382 = vmatpush1.msra.mxu0 %v334
  %383 = vmatprep.subr.mxu0 0.0
  %384 = vmatpush1.msra.mxu0 %v333
  %385 = vmatprep.subr.mxu0 0.0
  %386 = vmatpush1.msra.mxu0 %v332
  %387 = vmatprep.subr.mxu0 0.0
  %388 = vmatpush1.msra.mxu0 %v331
  %389 = vmatprep.subr.mxu0 0.0
  %390 = vmatpush2.msra.mxu0 0.0
  %391 = vmatprep.subr.mxu0 0.0
  %392 = vmatpush2.msra.mxu0 0.0
  %393 = vmatprep.subr.mxu0 0.0
  %394 = vmatpush2.msra.mxu0 0.0
  %395 = vmatprep.subr.mxu0 0.0
  %396 = vmatpush2.msra.mxu0 0.0
  %397 = vmatprep.subr.mxu0 0.0
  %398 = vmatpush2.msra.mxu0 0.0
  %399 = vmatprep.subr.mxu0 0.0
  %400 = vmatpush2.msra.mxu0 0.0
  %401 = vmatprep.subr.mxu0 0.0
  %402 = vmatpush2.msra.mxu0 0.0
  %403 = vmatprep.subr.mxu0 0.0
  %404 = vmatpush2.msra.mxu0 0.0
  %405 = vmatprep.subr.mxu0 0.0
  %406 = vmatpush2.msra.mxu0 0.0
  %407 = vmatprep.subr.mxu0 0.0
  %408 = vmatpush2.msra.mxu0 0.0
  %409 = vmatprep.subr.mxu0 0.0
  %410 = vmatpush2.msra.mxu0 0.0
  %411 = vmatprep.subr.mxu0 0.0
  %412 = vmatpush2.msra.mxu0 0.0
  %413 = vmatprep.subr.mxu0 0.0
  %414 = vmatpush2.msra.mxu0 0.0
  %415 = vmatprep.subr.mxu0 0.0
  %416 = vmatpush2.msra.mxu0 0.0
  %417 = vmatprep.subr.mxu0 0.0
  %418 = vmatpush2.msra.mxu0 0.0
  %419 = vmatprep.subr.mxu0 0.0
  %420 = vmatpush2.msra.mxu0 0.0
  %421 = vmatprep.mubr.f32.mxu0 0.0
  %422 = vmatmul.mubr.f32.gmra.mxu0 %v351
  %v423 = vpop.f32.mrf.mxu0
  %v424 = vadd.f32 %v347, %v423
  %v425 = vpop.f32.mrf.mxu0
  %426 = vdwg.mxu0
  %vm427 = vcmask 80896
  %428 = vst.msk [vmem:[%s7] sm:$0xff] %vm427, %v424
  %v429 = vsel %vm427, %v424, -inf
  %430 = vmax.xlane.f32.xlu0 %v429
  %v431 = vpop.xlane.xlu0 %430
  %v432 = vsub.f32 %v424, %v431
  %v433 = vmul.f32 %v432, 1.442695
  %v434 = vpow.pop %v433
  %v435 = vsel %vm427, %v434, 0.0
  %436 = vadd.xlane.f32.xlu0 %v435
  %v437 = vpop.xlane.xlu0 %436
  %v438 = vrcp.pop %v437
  %v439 = vmul.f32 %v434, %v438
  %440 = vst.msk [vmem:[%s8] sm:$0xff] %vm427, %v439
  // Predicated region
  $region30: #{lenet5_forward.5} parent=0 // pred_check
    _
  $region31: #{lenet5_forward.5} parent=0 // pred_check_branch
    %442 = sbr.rel (0) target = $region33
  $region32: #{lenet5_forward.5} parent=0 // pred_region
    _
  $region33: #{lenet5_forward.5} parent=0 // pred_fallthru
    _
  // Predicated region
  $region34: #{lenet5_forward.5} parent=0 // pred_check
    _
  $region35: #{lenet5_forward.5} parent=0 // pred_check_branch
    %444 = sbr.rel (0) target = $region37
  $region36: #{lenet5_forward.5} parent=0 // pred_region
    _
  $region37: #{lenet5_forward.5} parent=0 // pred_fallthru
    _
  // Predicated region
  $region38: #{lenet5_forward.5} parent=0 // pred_check
    _
  $region39: #{lenet5_forward.5} parent=0 // pred_check_branch
    %446 = sbr.rel (0) target = $region41
  $region40: #{lenet5_forward.5} parent=0 // pred_region
    _
  $region41: #{lenet5_forward.5} parent=0 // pred_fallthru
    _
  // Predicated region
  $region42: #{lenet5_forward.5} parent=0 // pred_check
    _
  $region43: #{lenet5_forward.5} parent=0 // pred_check_branch
    %448 = sbr.rel (0) target = $region45
  $region44: #{lenet5_forward.5} parent=0 // pred_region
    _
  $region45: #{lenet5_forward.5} parent=0 // pred_fallthru
    _

</llo_original>
